<compile_context>
chip_gen: v6e
topology: v6e:2x2x1
jax: 0.10.0
libtpu: 0.0.40
codegen_flags: <defaults>
</compile_context>

<pallas_src>
import functools

import jax
import jax.numpy as jnp
from jax import lax
from jax.experimental import pallas as pl
from jax.experimental.pallas import tpu as pltpu

SMOOTH = 1e-5
LAMBDA_GDICE = 0.5
LAMBDA_CE = 0.5


def _gdice_ce_kernel(x_ref, t_ref, o_ref,
                     inter_ref, ground_ref, pred_ref, ce_lse_ref, ce_tgt_ref,
                     *, k, C, hw, tile, n_tiles, has_tail, dice_scale, ce_scale):
    ti = pl.program_id(1)
    kC = k * C

    @pl.when(ti == 0)
    def _init():
        inter_ref[...] = jnp.zeros_like(inter_ref)
        ground_ref[...] = jnp.zeros_like(ground_ref)
        pred_ref[...] = jnp.zeros_like(pred_ref)
        ce_lse_ref[...] = jnp.zeros_like(ce_lse_ref)
        ce_tgt_ref[...] = jnp.zeros_like(ce_tgt_ref)

    def lane_fold(a):
        # (R, tile) -> (R, 128) by pairwise halving (tile is a power-of-two multiple
        # of 128).  Keeps per-step scratch stores lane-dense and moves the one
        # cross-lane XLU reduce out of the hot loop into the finalize block.
        w = a.shape[-1]
        while w > 128:
            w //= 2
            a = a[:, :w] + a[:, w:]
        return a

    def accumulate(masked):
        x = x_ref[0].astype(jnp.float32)        # (kC, tile) logits (upcast after load)
        tgt = t_ref[0].astype(jnp.float32)      # (k,  tile) integer class labels

        if masked:
            pix = ti * tile + lax.broadcasted_iota(jnp.int32, (1, tile), 1)
            valid = pix < hw                    # (1, tile) bool
            validf = valid.astype(jnp.float32)
            # edge-block lanes hold unspecified data: kill them BEFORE the exp.
            x = jnp.where(valid, x, 0.0)

        row_i = lax.broadcasted_iota(jnp.int32, (kC, tile), 0)   # global row id
        row_f = row_i.astype(jnp.float32)

        if k == 1:
            # one batch item per block: plain channel reductions + natural broadcasts.
            m_b = jnp.max(x, axis=0, keepdims=True)              # (1, tile)
            m_c = m_b
            e = jnp.exp(x - m_b)                                  # (C, tile)
            s_c = jnp.sum(e, axis=0, keepdims=True)               # (1, tile)
            tgt_g = tgt                                           # (1, tile)
        else:
            # k batch items packed along sublanes: segments of C consecutive rows.
            ki = lax.broadcasted_iota(jnp.int32, (k, tile), 0)
            m_b = jnp.zeros((kC, tile), jnp.float32)
            m_c = jnp.zeros((k, tile), jnp.float32)
            for j in range(k):                                    # per-segment max
                if j == 0:
                    sel = row_i < C
                elif j == k - 1:
                    sel = row_i >= j * C
                else:
                    sel = (row_i >= j * C) & (row_i < (j + 1) * C)
                m_j = jnp.max(jnp.where(sel, x, -jnp.inf), axis=0, keepdims=True)
                m_b = jnp.where(sel, m_j, m_b)
                m_c = jnp.where(ki == j, m_j, m_c)
            e = jnp.exp(x - m_b)                                  # (kC, tile)

            # segment sums / broadcasts via tiny ones-block matmuls (MXU slot; keeps
            # the VPU/XLU free).
            ii = lax.broadcasted_iota(jnp.int32, (k, kC), 1)
            jj = lax.broadcasted_iota(jnp.int32, (k, kC), 0)
            seg_sum = ((ii >= jj * C) & (ii < (jj + 1) * C)).astype(jnp.float32)  # (k,kC)
            i2 = lax.broadcasted_iota(jnp.int32, (kC, k), 0)
            j2 = lax.broadcasted_iota(jnp.int32, (kC, k), 1)
            seg_bc = ((i2 >= j2 * C) & (i2 < (j2 + 1) * C)).astype(jnp.float32)   # (kC,k)

            s_c = jnp.dot(seg_sum, e, precision=lax.Precision.HIGHEST,
                          preferred_element_type=jnp.float32)     # (k, tile)
            off = (C * ki).astype(jnp.float32)
            tgt_g = jnp.dot(seg_bc, tgt + off, precision=lax.Precision.HIGHEST,
                            preferred_element_type=jnp.float32)   # (kC, tile) global ids

        # softmax denominator: EUP approx reciprocal + one Newton step (~f32 exact).
        inv_c = pl.reciprocal(s_c, approx=True)
        inv_c = inv_c * (2.0 - s_c * inv_c)
        lse_c = jnp.log(s_c) + m_c                                # (k, tile) logsumexp

        if k == 1:
            inv_b = inv_c
        else:
            inv_b = jnp.dot(seg_bc, inv_c, precision=lax.Precision.HIGHEST,
                            preferred_element_type=jnp.float32)   # (kC, tile)
        p = e * inv_b                                             # softmax probabilities

        onehot = row_f == tgt_g                                   # (kC, tile) bool
        if masked:
            onehot_f = jnp.where(onehot, validf, 0.0)
            p_acc = p * validf
            lse_acc = lse_c * validf
        else:
            onehot_f = jnp.where(onehot, 1.0, 0.0)
            p_acc = p
            lse_acc = lse_c

        pred_ref[...] += lane_fold(p_acc)                         # (kC, 128)
        inter_ref[...] += lane_fold(p * onehot_f)                 # (kC, 128)
        ground_ref[...] += lane_fold(onehot_f)                    # (kC, 128)
        ce_tgt_ref[...] += lane_fold(x * onehot_f)                # (kC, 128)  sum x[target]
        ce_lse_ref[...] += lane_fold(lse_acc)                     # (k,  128)  sum logsumexp

    # Only the last tile can contain padding: interior tiles take the unmasked path.
    if not has_tail:
        accumulate(False)
    elif n_tiles == 1:
        accumulate(True)
    else:
        last = n_tiles - 1

        @pl.when(ti < last)
        def _interior():
            accumulate(False)

        @pl.when(ti == last)
        def _tail():
            accumulate(True)

    @pl.when(ti == n_tiles - 1)
    def _finalize():
        g = jnp.sum(ground_ref[...], axis=1, keepdims=True)       # (kC, 1)
        pr = jnp.sum(pred_ref[...], axis=1, keepdims=True)        # (kC, 1)
        it = jnp.sum(inter_ref[...], axis=1, keepdims=True)       # (kC, 1)
        wei = 1.0 / (g * g + SMOOTH)
        dice = 1.0 - 2.0 * (wei * it) / (wei * (g + pr) + SMOOTH)  # (kC, 1)
        dice_sum = jnp.sum(dice, axis=0, keepdims=True)            # (1, 1)
        ce_lse = jnp.sum(jnp.sum(ce_lse_ref[...], axis=1, keepdims=True),
                         axis=0, keepdims=True)                    # (1, 1)
        ce_tgt = jnp.sum(jnp.sum(ce_tgt_ref[...], axis=1, keepdims=True),
                         axis=0, keepdims=True)                    # (1, 1)
        ce_sum = ce_lse - ce_tgt
        loss_b = (LAMBDA_GDICE * dice_scale * dice_sum
                  + LAMBDA_CE * ce_scale * ce_sum)                 # (1, 1)
        o_ref[...] = loss_b.reshape(1, 1, 1)


def generalized_dice_ce_loss(logits, target):
    """logits: (B, C, H, W) float; target: (B, 1, H, W) or (B, H, W) integer labels."""
    B, C, H, W = logits.shape
    HW = H * W

    # --- batch packing: fill all 8 f32 sublanes of each vreg when C < 8 ---
    k = 1
    if C < 8:
        k = max(1, 8 // C)
        while k > 1 and B % k != 0:
            k -= 1
    kC = k * C
    G = B // k

    if not jnp.issubdtype(target.dtype, jnp.integer):
        target = target.astype(jnp.int32)
    # Pure view reshapes: no HBM copies, logits stay in their native dtype.
    x = logits.reshape(G, kC, HW)
    t = target.reshape(G, k, HW)

    # --- pixel tile: lane-dense, power-of-two multiple of 128, sized from a per-step
    #     HBM byte target with a generation-aware VMEM budget (v7x has only 64 MiB).
    x_item = x.dtype.itemsize
    try:
        vmem_cap = int(pltpu.get_tpu_info().vmem_capacity_bytes)
    except Exception:
        vmem_cap = 64 << 20  # conservative default (v7x-sized)
    if vmem_cap >= (100 << 20):          # v5e / v6e class (128 MiB VMEM)
        blk_target_bytes, vmem_limit = (2 << 20), (64 << 20)
    else:                                 # v7x class (64 MiB VMEM)
        blk_target_bytes, vmem_limit = (1 << 20), (32 << 20)
    lanes_cap = max(1, blk_target_bytes // (kC * x_item) // 128)
    lanes = max(1, min(lanes_cap, pl.cdiv(HW, 128)))
    tile = 128 * (1 << (lanes.bit_length() - 1))   # power-of-two multiple of 128
    n_tiles = pl.cdiv(HW, tile)                    # no jnp.pad: last block is masked
    has_tail = (HW % tile) != 0

    dice_scale = 1.0 / (B * C)     # mean over (B, C) dice terms
    ce_scale = 1.0 / (B * HW)      # mean over all pixels

    kernel = functools.partial(
        _gdice_ce_kernel, k=k, C=C, hw=HW, tile=tile, n_tiles=n_tiles,
        has_tail=has_tail, dice_scale=dice_scale, ce_scale=ce_scale)

    cost = pl.CostEstimate(
        flops=int(20 * B * C * HW),
        transcendentals=int(B * HW * (C + 2)),
        bytes_accessed=int(x.size * x_item + t.size * t.dtype.itemsize + G * 4),
    )

    out = pl.pallas_call(
        kernel,
        out_shape=jax.ShapeDtypeStruct((G, 1, 1), jnp.float32),
        grid_spec=pltpu.PrefetchScalarGridSpec(
            num_scalar_prefetch=0,
            grid=(G, n_tiles),
            in_specs=[
                pl.BlockSpec((1, kC, tile), lambda g, ti: (g, 0, ti)),
                pl.BlockSpec((1, k, tile), lambda g, ti: (g, 0, ti)),
            ],
            out_specs=pl.BlockSpec((1, 1, 1), lambda g, ti: (g, 0, 0)),
            scratch_shapes=[
                pltpu.VMEM((kC, 128), jnp.float32),   # intersection partials
                pltpu.VMEM((kC, 128), jnp.float32),   # ground_o partials
                pltpu.VMEM((kC, 128), jnp.float32),   # pred_o partials
                pltpu.VMEM((k, 128), jnp.float32),    # CE logsumexp partials
                pltpu.VMEM((kC, 128), jnp.float32),   # CE target-logit partials
            ],
        ),
        compiler_params=pltpu.CompilerParams(
            dimension_semantics=("parallel", "arbitrary"),
            vmem_limit_bytes=vmem_limit),
        cost_estimate=cost,
    )(x, t)
    return jnp.sum(out)


def _reference_loss(logits, target):
    """Plain-JAX mirror of generalizedDiceCELoss defaults:
    softmax + to_onehot_y + include_background, smooth=1e-5, lambda_ce=lambda_gdice=0.5."""
    B, C, H, W = logits.shape
    x = logits.astype(jnp.float32)
    tgt = target.reshape(B, H, W).astype(jnp.int32)
    onehot = jax.nn.one_hot(tgt, C, axis=1, dtype=jnp.float32)      # (B, C, H, W)

    # nn.CrossEntropyLoss(reduction='mean')
    logp = jax.nn.log_softmax(x, axis=1)
    ce_loss = -jnp.mean(jnp.sum(onehot * logp, axis=1))

    # generalizedDiceLoss(softmax=True, to_onehot_y=True, smooth=1e-5)
    p = jax.nn.softmax(x, axis=1)
    red = (2, 3)
    ground_o = jnp.sum(onehot, axis=red)
    output_o = jnp.sum(p, axis=red)
    inter = jnp.sum(onehot * p, axis=red)
    wei = 1.0 / (ground_o ** 2 + SMOOTH)
    gdice = 1.0 - 2.0 * (wei * inter) / (wei * (ground_o + output_o) + SMOOTH)
    gdice_loss = jnp.mean(gdice)

    return LAMBDA_CE * ce_loss + LAMBDA_GDICE * gdice_loss


if __name__ == "__main__":
    cases = [
        ((2, 4, 16, 16), "packed (k=2), full tiles"),
        ((2, 4, 15, 15), "packed (k=2), masked tail tile"),
        ((2, 8, 16, 16), "unpacked (C >= 8)"),
    ]
    keys = jax.random.split(jax.random.PRNGKey(0), 2 * len(cases))
    for idx, ((B, C, H, W), name) in enumerate(cases):
        kx, kt = keys[2 * idx], keys[2 * idx + 1]
        logits = jax.random.normal(kx, (B, C, H, W), dtype=jnp.float32)
        target = jax.random.randint(kt, (B, 1, H, W), 0, C, dtype=jnp.int32)

        loss = generalized_dice_ce_loss(logits, target)
        jax.block_until_ready(loss)

        ref = _reference_loss(logits, target)
        assert jnp.allclose(loss, ref, rtol=1e-4, atol=1e-5), (name, loss, ref)
    print("KERNEL_OK")
</pallas_src>

<mosaic_0001>
module attributes {stable_mosaic.version = 11 : i64} {
  func.func @_gdice_ce_kernel(%arg0: i32, %arg1: i32, %arg2: memref<1x8x256xf32, #tpu.memory_space<vmem>>, %arg3: memref<1x2x256xi32, #tpu.memory_space<vmem>>, %arg4: memref<1x1x1xf32, #tpu.memory_space<vmem>>, %arg5: memref<8x128xf32, #tpu.memory_space<vmem>>, %arg6: memref<8x128xf32, #tpu.memory_space<vmem>>, %arg7: memref<8x128xf32, #tpu.memory_space<vmem>>, %arg8: memref<2x128xf32, #tpu.memory_space<vmem>>, %arg9: memref<8x128xf32, #tpu.memory_space<vmem>>) attributes {dimension_semantics = [#tpu.dimension_semantics<parallel>, #tpu.dimension_semantics<arbitrary>], iteration_bounds = array<i64: 1, 1>, scalar_prefetch = 0 : i64, scratch_operands = 5 : i64, tpu.core_type = #tpu.core_type<tc>, window_params = [{transform_indices = @transform_0, window_bounds = array<i64: 1, 8, 256>}, {transform_indices = @transform_1, window_bounds = array<i64: 1, 2, 256>}, {transform_indices = @transform_2, window_bounds = array<i64: 1, 1, 1>}]} {
    %c0_i32 = arith.constant 0 : i32
    %0 = arith.cmpi eq, %arg1, %c0_i32 : i32
    %1 = arith.extui %0 : i1 to i32
    %c0_i32_0 = arith.constant 0 : i32
    %2 = arith.cmpi ne, %1, %c0_i32_0 : i32
    scf.if %2 {
      %cst_48 = arith.constant 0.000000e+00 : f32
      %123 = vector.broadcast %cst_48 : f32 to vector<8x128xf32>
      %c0_49 = arith.constant 0 : index
      %c0_50 = arith.constant 0 : index
      %124 = vector.load %arg5[%c0_49, %c0_50] : memref<8x128xf32, #tpu.memory_space<vmem>>, vector<8x128xf32>
      tpu.vector_store %arg5[%c0_49, %c0_50], %123 {strides = array<i32>} : memref<8x128xf32, #tpu.memory_space<vmem>>, vector<8x128xf32>,
      %cst_51 = arith.constant 0.000000e+00 : f32
      %125 = vector.broadcast %cst_51 : f32 to vector<8x128xf32>
      %c0_52 = arith.constant 0 : index
      %c0_53 = arith.constant 0 : index
      %126 = vector.load %arg6[%c0_52, %c0_53] : memref<8x128xf32, #tpu.memory_space<vmem>>, vector<8x128xf32>
      tpu.vector_store %arg6[%c0_52, %c0_53], %125 {strides = array<i32>} : memref<8x128xf32, #tpu.memory_space<vmem>>, vector<8x128xf32>,
      %cst_54 = arith.constant 0.000000e+00 : f32
      %127 = vector.broadcast %cst_54 : f32 to vector<8x128xf32>
      %c0_55 = arith.constant 0 : index
      %c0_56 = arith.constant 0 : index
      %128 = vector.load %arg7[%c0_55, %c0_56] : memref<8x128xf32, #tpu.memory_space<vmem>>, vector<8x128xf32>
      tpu.vector_store %arg7[%c0_55, %c0_56], %127 {strides = array<i32>} : memref<8x128xf32, #tpu.memory_space<vmem>>, vector<8x128xf32>,
      %cst_57 = arith.constant 0.000000e+00 : f32
      %129 = vector.broadcast %cst_57 : f32 to vector<2x128xf32>
      %c0_58 = arith.constant 0 : index
      %c0_59 = arith.constant 0 : index
      %130 = vector.load %arg8[%c0_58, %c0_59] : memref<2x128xf32, #tpu.memory_space<vmem>>, vector<2x128xf32>
      tpu.vector_store %arg8[%c0_58, %c0_59], %129 {strides = array<i32>} : memref<2x128xf32, #tpu.memory_space<vmem>>, vector<2x128xf32>,
      %cst_60 = arith.constant 0.000000e+00 : f32
      %131 = vector.broadcast %cst_60 : f32 to vector<8x128xf32>
      %c0_61 = arith.constant 0 : index
      %c0_62 = arith.constant 0 : index
      %132 = vector.load %arg9[%c0_61, %c0_62] : memref<8x128xf32, #tpu.memory_space<vmem>>, vector<8x128xf32>
      tpu.vector_store %arg9[%c0_61, %c0_62], %131 {strides = array<i32>} : memref<8x128xf32, #tpu.memory_space<vmem>>, vector<8x128xf32>,
    } else {
    }
    %c0 = arith.constant 0 : index
    %c0_1 = arith.constant 0 : index
    %c0_2 = arith.constant 0 : index
    %3 = vector.load %arg2[%c0, %c0_1, %c0_2] : memref<1x8x256xf32, #tpu.memory_space<vmem>>, vector<1x8x256xf32>
    %4 = vector.shape_cast %3 : vector<1x8x256xf32> to vector<8x256xf32>
    %c0_3 = arith.constant 0 : index
    %c0_4 = arith.constant 0 : index
    %c0_5 = arith.constant 0 : index
    %5 = vector.load %arg3[%c0_3, %c0_4, %c0_5] : memref<1x2x256xi32, #tpu.memory_space<vmem>>, vector<1x2x256xi32>
    %6 = vector.shape_cast %5 : vector<1x2x256xi32> to vector<2x256xi32>
    %7 = arith.sitofp %6 : vector<2x256xi32> to vector<2x256xf32>
    %8 = tpu.iota {dimensions = array<i32: 0>} : vector<8x256xi32>
    %9 = arith.sitofp %8 : vector<8x256xi32> to vector<8x256xf32>
    %10 = tpu.iota {dimensions = array<i32: 0>} : vector<2x256xi32>
    %cst = arith.constant 0.000000e+00 : f32
    %11 = vector.broadcast %cst : f32 to vector<8x256xf32>
    %cst_6 = arith.constant 0.000000e+00 : f32
    %12 = vector.broadcast %cst_6 : f32 to vector<2x256xf32>
    %c4_i32 = arith.constant 4 : i32
    %13 = vector.broadcast %c4_i32 : i32 to vector<8x256xi32>
    %14 = arith.cmpi slt, %8, %13 : vector<8x256xi32>
    %cst_7 = arith.constant 0xFF800000 : f32
    %15 = vector.broadcast %cst_7 : f32 to vector<8x256xf32>
    %16 = arith.select %14, %4, %15 : vector<8x256xi1>, vector<8x256xf32>
    %cst_8 = arith.constant dense<0xFF800000> : vector<256xf32>
    %17 = vector.multi_reduction <maximumf>, %16, %cst_8 [0] : vector<8x256xf32> to vector<256xf32>
    %18 = vector.shape_cast %17 : vector<256xf32> to vector<1x256xf32>
    %19 = vector.shape_cast %18 : vector<1x256xf32> to vector<1x256xf32>
    %20 = vector.broadcast %19 : vector<1x256xf32> to vector<8x256xf32>
    %21 = arith.select %14, %20, %11 : vector<8x256xi1>, vector<8x256xf32>
    %c0_i32_9 = arith.constant 0 : i32
    %22 = vector.broadcast %c0_i32_9 : i32 to vector<2x256xi32>
    %23 = arith.cmpi eq, %10, %22 : vector<2x256xi32>
    %24 = vector.shape_cast %18 : vector<1x256xf32> to vector<1x256xf32>
    %25 = vector.broadcast %24 : vector<1x256xf32> to vector<2x256xf32>
    %26 = arith.select %23, %25, %12 : vector<2x256xi1>, vector<2x256xf32>
    %c4_i32_10 = arith.constant 4 : i32
    %27 = vector.broadcast %c4_i32_10 : i32 to vector<8x256xi32>
    %28 = arith.cmpi sge, %8, %27 : vector<8x256xi32>
    %cst_11 = arith.constant 0xFF800000 : f32
    %29 = vector.broadcast %cst_11 : f32 to vector<8x256xf32>
    %30 = arith.select %28, %4, %29 : vector<8x256xi1>, vector<8x256xf32>
    %cst_12 = arith.constant dense<0xFF800000> : vector<256xf32>
    %31 = vector.multi_reduction <maximumf>, %30, %cst_12 [0] : vector<8x256xf32> to vector<256xf32>
    %32 = vector.shape_cast %31 : vector<256xf32> to vector<1x256xf32>
    %33 = vector.shape_cast %32 : vector<1x256xf32> to vector<1x256xf32>
    %34 = vector.broadcast %33 : vector<1x256xf32> to vector<8x256xf32>
    %35 = arith.select %28, %34, %21 : vector<8x256xi1>, vector<8x256xf32>
    %c1_i32 = arith.constant 1 : i32
    %36 = vector.broadcast %c1_i32 : i32 to vector<2x256xi32>
    %37 = arith.cmpi eq, %10, %36 : vector<2x256xi32>
    %38 = vector.shape_cast %32 : vector<1x256xf32> to vector<1x256xf32>
    %39 = vector.broadcast %38 : vector<1x256xf32> to vector<2x256xf32>
    %40 = arith.select %37, %39, %26 : vector<2x256xi1>, vector<2x256xf32>
    %41 = arith.subf %4, %35 : vector<8x256xf32>
    %42 = math.exp %41 : vector<8x256xf32>
    %43 = tpu.iota {dimensions = array<i32: 1>} : vector<2x8xi32>
    %44 = tpu.iota {dimensions = array<i32: 0>} : vector<2x8xi32>
    %c4_i32_13 = arith.constant 4 : i32
    %45 = vector.broadcast %c4_i32_13 : i32 to vector<2x8xi32>
    %46 = arith.muli %44, %45 : vector<2x8xi32>
    %47 = arith.cmpi sge, %43, %46 : vector<2x8xi32>
    %c1_i32_14 = arith.constant 1 : i32
    %48 = vector.broadcast %c1_i32_14 : i32 to vector<2x8xi32>
    %49 = arith.addi %44, %48 : vector<2x8xi32>
    %c4_i32_15 = arith.constant 4 : i32
    %50 = vector.broadcast %c4_i32_15 : i32 to vector<2x8xi32>
    %51 = arith.muli %49, %50 : vector<2x8xi32>
    %52 = arith.cmpi slt, %43, %51 : vector<2x8xi32>
    %53 = arith.andi %47, %52 : vector<2x8xi1>
    %54 = arith.extui %53 : vector<2x8xi1> to vector<2x8xi32>
    %55 = arith.sitofp %54 : vector<2x8xi32> to vector<2x8xf32>
    %56 = tpu.iota {dimensions = array<i32: 0>} : vector<8x2xi32>
    %57 = tpu.iota {dimensions = array<i32: 1>} : vector<8x2xi32>
    %c4_i32_16 = arith.constant 4 : i32
    %58 = vector.broadcast %c4_i32_16 : i32 to vector<8x2xi32>
    %59 = arith.muli %57, %58 : vector<8x2xi32>
    %60 = arith.cmpi sge, %56, %59 : vector<8x2xi32>
    %c1_i32_17 = arith.constant 1 : i32
    %61 = vector.broadcast %c1_i32_17 : i32 to vector<8x2xi32>
    %62 = arith.addi %57, %61 : vector<8x2xi32>
    %c4_i32_18 = arith.constant 4 : i32
    %63 = vector.broadcast %c4_i32_18 : i32 to vector<8x2xi32>
    %64 = arith.muli %62, %63 : vector<8x2xi32>
    %65 = arith.cmpi slt, %56, %64 : vector<8x2xi32>
    %66 = arith.andi %60, %65 : vector<8x2xi1>
    %67 = arith.extui %66 : vector<8x2xi1> to vector<8x2xi32>
    %68 = arith.sitofp %67 : vector<8x2xi32> to vector<8x2xf32>
    %cst_19 = arith.constant dense<0.000000e+00> : vector<2x256xf32>
    %69 = tpu.matmul %55, %42, %cst_19 {dimension_numbers = #tpu.dot_dimension_numbers<[1], [0], [0], [1], [0, 0, 1, 1], [], []>, precision = #tpu.contract_precision<fp32>} : vector<2x8xf32>, vector<8x256xf32>, vector<2x256xf32> -> vector<2x256xf32>
    %c4_i32_20 = arith.constant 4 : i32
    %70 = vector.broadcast %c4_i32_20 : i32 to vector<2x256xi32>
    %71 = arith.muli %70, %10 : vector<2x256xi32>
    %72 = arith.sitofp %71 : vector<2x256xi32> to vector<2x256xf32>
    %73 = arith.addf %7, %72 : vector<2x256xf32>
    %cst_21 = arith.constant dense<0.000000e+00> : vector<8x256xf32>
    %74 = tpu.matmul %68, %73, %cst_21 {dimension_numbers = #tpu.dot_dimension_numbers<[1], [0], [0], [1], [0, 0, 1, 1], [], []>, precision = #tpu.contract_precision<fp32>} : vector<8x2xf32>, vector<2x256xf32>, vector<8x256xf32> -> vector<8x256xf32>
    %75 = tpu.reciprocal %69 {approx = true} : vector<2x256xf32> -> vector<2x256xf32>
    %76 = arith.mulf %69, %75 : vector<2x256xf32>
    %cst_22 = arith.constant 2.000000e+00 : f32
    %77 = vector.broadcast %cst_22 : f32 to vector<2x256xf32>
    %78 = arith.subf %77, %76 : vector<2x256xf32>
    %79 = arith.mulf %75, %78 : vector<2x256xf32>
    %80 = math.log %69 : vector<2x256xf32>
    %81 = arith.addf %80, %40 : vector<2x256xf32>
    %cst_23 = arith.constant dense<0.000000e+00> : vector<8x256xf32>
    %82 = tpu.matmul %68, %79, %cst_23 {dimension_numbers = #tpu.dot_dimension_numbers<[1], [0], [0], [1], [0, 0, 1, 1], [], []>, precision = #tpu.contract_precision<fp32>} : vector<8x2xf32>, vector<2x256xf32>, vector<8x256xf32> -> vector<8x256xf32>
    %83 = arith.mulf %42, %82 : vector<8x256xf32>
    %84 = arith.cmpf oeq, %9, %74 : vector<8x256xf32>
    %cst_24 = arith.constant 1.000000e+00 : f32
    %cst_25 = arith.constant 0.000000e+00 : f32
    %85 = vector.broadcast %cst_24 : f32 to vector<8x256xf32>
    %86 = vector.broadcast %cst_25 : f32 to vector<8x256xf32>
    %87 = arith.select %84, %85, %86 : vector<8x256xi1>, vector<8x256xf32>
    %c0_26 = arith.constant 0 : index
    %c0_27 = arith.constant 0 : index
    %88 = vector.load %arg7[%c0_26, %c0_27] : memref<8x128xf32, #tpu.memory_space<vmem>>, vector<8x128xf32>
    %89 = vector.extract_strided_slice %83 {offsets = [0, 0], sizes = [8, 128], strides = [1, 1]} : vector<8x256xf32> to vector<8x128xf32>
    %90 = vector.extract_strided_slice %83 {offsets = [0, 128], sizes = [8, 128], strides = [1, 1]} : vector<8x256xf32> to vector<8x128xf32>
    %91 = arith.addf %89, %90 : vector<8x128xf32>
    %92 = arith.addf %88, %91 : vector<8x128xf32>
    %c0_28 = arith.constant 0 : index
    %c0_29 = arith.constant 0 : index
    %93 = vector.load %arg7[%c0_28, %c0_29] : memref<8x128xf32, #tpu.memory_space<vmem>>, vector<8x128xf32>
    tpu.vector_store %arg7[%c0_28, %c0_29], %92 {strides = array<i32>} : memref<8x128xf32, #tpu.memory_space<vmem>>, vector<8x128xf32>,
    %c0_30 = arith.constant 0 : index
    %c0_31 = arith.constant 0 : index
    %94 = vector.load %arg5[%c0_30, %c0_31] : memref<8x128xf32, #tpu.memory_space<vmem>>, vector<8x128xf32>
    %95 = arith.mulf %83, %87 : vector<8x256xf32>
    %96 = vector.extract_strided_slice %95 {offsets = [0, 0], sizes = [8, 128], strides = [1, 1]} : vector<8x256xf32> to vector<8x128xf32>
    %97 = vector.extract_strided_slice %95 {offsets = [0, 128], sizes = [8, 128], strides = [1, 1]} : vector<8x256xf32> to vector<8x128xf32>
    %98 = arith.addf %96, %97 : vector<8x128xf32>
    %99 = arith.addf %94, %98 : vector<8x128xf32>
    %c0_32 = arith.constant 0 : index
    %c0_33 = arith.constant 0 : index
    %100 = vector.load %arg5[%c0_32, %c0_33] : memref<8x128xf32, #tpu.memory_space<vmem>>, vector<8x128xf32>
    tpu.vector_store %arg5[%c0_32, %c0_33], %99 {strides = array<i32>} : memref<8x128xf32, #tpu.memory_space<vmem>>, vector<8x128xf32>,
    %c0_34 = arith.constant 0 : index
    %c0_35 = arith.constant 0 : index
    %101 = vector.load %arg6[%c0_34, %c0_35] : memref<8x128xf32, #tpu.memory_space<vmem>>, vector<8x128xf32>
    %102 = vector.extract_strided_slice %87 {offsets = [0, 0], sizes = [8, 128], strides = [1, 1]} : vector<8x256xf32> to vector<8x128xf32>
    %103 = vector.extract_strided_slice %87 {offsets = [0, 128], sizes = [8, 128], strides = [1, 1]} : vector<8x256xf32> to vector<8x128xf32>
    %104 = arith.addf %102, %103 : vector<8x128xf32>
    %105 = arith.addf %101, %104 : vector<8x128xf32>
    %c0_36 = arith.constant 0 : index
    %c0_37 = arith.constant 0 : index
    %106 = vector.load %arg6[%c0_36, %c0_37] : memref<8x128xf32, #tpu.memory_space<vmem>>, vector<8x128xf32>
    tpu.vector_store %arg6[%c0_36, %c0_37], %105 {strides = array<i32>} : memref<8x128xf32, #tpu.memory_space<vmem>>, vector<8x128xf32>,
    %c0_38 = arith.constant 0 : index
    %c0_39 = arith.constant 0 : index
    %107 = vector.load %arg9[%c0_38, %c0_39] : memref<8x128xf32, #tpu.memory_space<vmem>>, vector<8x128xf32>
    %108 = arith.mulf %4, %87 : vector<8x256xf32>
    %109 = vector.extract_strided_slice %108 {offsets = [0, 0], sizes = [8, 128], strides = [1, 1]} : vector<8x256xf32> to vector<8x128xf32>
    %110 = vector.extract_strided_slice %108 {offsets = [0, 128], sizes = [8, 128], strides = [1, 1]} : vector<8x256xf32> to vector<8x128xf32>
    %111 = arith.addf %109, %110 : vector<8x128xf32>
    %112 = arith.addf %107, %111 : vector<8x128xf32>
    %c0_40 = arith.constant 0 : index
    %c0_41 = arith.constant 0 : index
    %113 = vector.load %arg9[%c0_40, %c0_41] : memref<8x128xf32, #tpu.memory_space<vmem>>, vector<8x128xf32>
    tpu.vector_store %arg9[%c0_40, %c0_41], %112 {strides = array<i32>} : memref<8x128xf32, #tpu.memory_space<vmem>>, vector<8x128xf32>,
    %c0_42 = arith.constant 0 : index
    %c0_43 = arith.constant 0 : index
    %114 = vector.load %arg8[%c0_42, %c0_43] : memref<2x128xf32, #tpu.memory_space<vmem>>, vector<2x128xf32>
    %115 = vector.extract_strided_slice %81 {offsets = [0, 0], sizes = [2, 128], strides = [1, 1]} : vector<2x256xf32> to vector<2x128xf32>
    %116 = vector.extract_strided_slice %81 {offsets = [0, 128], sizes = [2, 128], strides = [1, 1]} : vector<2x256xf32> to vector<2x128xf32>
    %117 = arith.addf %115, %116 : vector<2x128xf32>
    %118 = arith.addf %114, %117 : vector<2x128xf32>
    %c0_44 = arith.constant 0 : index
    %c0_45 = arith.constant 0 : index
    %119 = vector.load %arg8[%c0_44, %c0_45] : memref<2x128xf32, #tpu.memory_space<vmem>>, vector<2x128xf32>
    tpu.vector_store %arg8[%c0_44, %c0_45], %118 {strides = array<i32>} : memref<2x128xf32, #tpu.memory_space<vmem>>, vector<2x128xf32>,
    %c0_i32_46 = arith.constant 0 : i32
    %120 = arith.cmpi eq, %arg1, %c0_i32_46 : i32
    %121 = arith.extui %120 : i1 to i32
    %c0_i32_47 = arith.constant 0 : i32
    %122 = arith.cmpi ne, %121, %c0_i32_47 : i32
    scf.if %122 {
      %c0_48 = arith.constant 0 : index
      %c0_49 = arith.constant 0 : index
      %123 = vector.load %arg6[%c0_48, %c0_49] : memref<8x128xf32, #tpu.memory_space<vmem>>, vector<8x128xf32>
      %cst_50 = arith.constant dense<0.000000e+00> : vector<8xf32>
      %124 = vector.multi_reduction <add>, %123, %cst_50 [1] : vector<8x128xf32> to vector<8xf32>
      %125 = vector.shape_cast %124 : vector<8xf32> to vector<8x1xf32>
      %c0_51 = arith.constant 0 : index
      %c0_52 = arith.constant 0 : index
      %126 = vector.load %arg7[%c0_51, %c0_52] : memref<8x128xf32, #tpu.memory_space<vmem>>, vector<8x128xf32>
      %cst_53 = arith.constant dense<0.000000e+00> : vector<8xf32>
      %127 = vector.multi_reduction <add>, %126, %cst_53 [1] : vector<8x128xf32> to vector<8xf32>
      %128 = vector.shape_cast %127 : vector<8xf32> to vector<8x1xf32>
      %c0_54 = arith.constant 0 : index
      %c0_55 = arith.constant 0 : index
      %129 = vector.load %arg5[%c0_54, %c0_55] : memref<8x128xf32, #tpu.memory_space<vmem>>, vector<8x128xf32>
      %cst_56 = arith.constant dense<0.000000e+00> : vector<8xf32>
      %130 = vector.multi_reduction <add>, %129, %cst_56 [1] : vector<8x128xf32> to vector<8xf32>
      %131 = vector.shape_cast %130 : vector<8xf32> to vector<8x1xf32>
      %132 = arith.mulf %125, %125 : vector<8x1xf32>
      %cst_57 = arith.constant 9.99999974E-6 : f32
      %133 = vector.broadcast %cst_57 : f32 to vector<8x1xf32>
      %134 = arith.addf %132, %133 : vector<8x1xf32>
      %cst_58 = arith.constant 1.000000e+00 : f32
      %135 = vector.broadcast %cst_58 : f32 to vector<8x1xf32>
      %136 = arith.divf %135, %134 : vector<8x1xf32>
      %137 = arith.mulf %136, %131 : vector<8x1xf32>
      %cst_59 = arith.constant 2.000000e+00 : f32
      %138 = vector.broadcast %cst_59 : f32 to vector<8x1xf32>
      %139 = arith.mulf %138, %137 : vector<8x1xf32>
      %140 = arith.addf %125, %128 : vector<8x1xf32>
      %141 = arith.mulf %136, %140 : vector<8x1xf32>
      %cst_60 = arith.constant 9.99999974E-6 : f32
      %142 = vector.broadcast %cst_60 : f32 to vector<8x1xf32>
      %143 = arith.addf %141, %142 : vector<8x1xf32>
      %144 = arith.divf %139, %143 : vector<8x1xf32>
      %cst_61 = arith.constant 1.000000e+00 : f32
      %145 = vector.broadcast %cst_61 : f32 to vector<8x1xf32>
      %146 = arith.subf %145, %144 : vector<8x1xf32>
      %cst_62 = arith.constant dense<0.000000e+00> : vector<1xf32>
      %147 = vector.multi_reduction <add>, %146, %cst_62 [0] : vector<8x1xf32> to vector<1xf32>
      %148 = vector.shape_cast %147 : vector<1xf32> to vector<1x1xf32>
      %c0_63 = arith.constant 0 : index
      %c0_64 = arith.constant 0 : index
      %149 = vector.load %arg8[%c0_63, %c0_64] : memref<2x128xf32, #tpu.memory_space<vmem>>, vector<2x128xf32>
      %cst_65 = arith.constant dense<0.000000e+00> : vector<2xf32>
      %150 = vector.multi_reduction <add>, %149, %cst_65 [1] : vector<2x128xf32> to vector<2xf32>
      %151 = vector.shape_cast %150 : vector<2xf32> to vector<2x1xf32>
      %cst_66 = arith.constant dense<0.000000e+00> : vector<1xf32>
      %152 = vector.multi_reduction <add>, %151, %cst_66 [0] : vector<2x1xf32> to vector<1xf32>
      %153 = vector.shape_cast %152 : vector<1xf32> to vector<1x1xf32>
      %c0_67 = arith.constant 0 : index
      %c0_68 = arith.constant 0 : index
      %154 = vector.load %arg9[%c0_67, %c0_68] : memref<8x128xf32, #tpu.memory_space<vmem>>, vector<8x128xf32>
      %cst_69 = arith.constant dense<0.000000e+00> : vector<8xf32>
      %155 = vector.multi_reduction <add>, %154, %cst_69 [1] : vector<8x128xf32> to vector<8xf32>
      %156 = vector.shape_cast %155 : vector<8xf32> to vector<8x1xf32>
      %cst_70 = arith.constant dense<0.000000e+00> : vector<1xf32>
      %157 = vector.multi_reduction <add>, %156, %cst_70 [0] : vector<8x1xf32> to vector<1xf32>
      %158 = vector.shape_cast %157 : vector<1xf32> to vector<1x1xf32>
      %159 = arith.subf %153, %158 : vector<1x1xf32>
      %cst_71 = arith.constant 6.250000e-02 : f32
      %160 = vector.broadcast %cst_71 : f32 to vector<1x1xf32>
      %161 = arith.mulf %160, %148 : vector<1x1xf32>
      %cst_72 = arith.constant 9.765625E-4 : f32
      %162 = vector.broadcast %cst_72 : f32 to vector<1x1xf32>
      %163 = arith.mulf %162, %159 : vector<1x1xf32>
      %164 = arith.addf %161, %163 : vector<1x1xf32>
      %165 = vector.shape_cast %164 : vector<1x1xf32> to vector<1x1x1xf32>
      %c0_73 = arith.constant 0 : index
      %c0_74 = arith.constant 0 : index
      %c0_75 = arith.constant 0 : index
      %166 = vector.load %arg4[%c0_73, %c0_74, %c0_75] : memref<1x1x1xf32, #tpu.memory_space<vmem>>, vector<1x1x1xf32>
      tpu.vector_store %arg4[%c0_73, %c0_74, %c0_75], %165 {strides = array<i32>} : memref<1x1x1xf32, #tpu.memory_space<vmem>>, vector<1x1x1xf32>,
    } else {
    }
    return
  }
  func.func @transform_0(%arg0: i32, %arg1: i32) -> (i32, i32, i32) {
    %c0_i32 = arith.constant 0 : i32
    %c0_i32_0 = arith.constant 0 : i32
    return %arg0, %c0_i32, %arg1 : i32, i32, i32
  }
  func.func @transform_1(%arg0: i32, %arg1: i32) -> (i32, i32, i32) {
    %c0_i32 = arith.constant 0 : i32
    %c0_i32_0 = arith.constant 0 : i32
    return %arg0, %c0_i32, %arg1 : i32, i32, i32
  }
  func.func @transform_2(%arg0: i32, %arg1: i32) -> (i32, i32, i32) {
    %c0_i32 = arith.constant 0 : i32
    %c0_i32_0 = arith.constant 0 : i32
    %c0_i32_1 = arith.constant 0 : i32
    return %arg0, %c0_i32, %c0_i32_0 : i32, i32, i32
  }
}

</mosaic_0001>

<llo_original>
// kernel: tpu_custom_call.1
$region0: #{tpu_custom_call.1}
  #allocation0 [shape = 'u32[]', space=smem, size = 0x4, offset = 0x4, fixed_abs, tag = 'smem constant byte address 0x4 - core index']
  #allocation1 [shape = 'u32[144,128]{1,0:T(1,128)}', space=vmem, size = 0x12000, scoped, tag = 'internal scratch']
  #allocation2 [shape = 'f32[8,128]{1,0:T(8,128)}', space=vmem, size = 0x1000, scoped, tag = 'scratch operand']
  #allocation3 [shape = 'f32[8,128]{1,0:T(8,128)}', space=vmem, size = 0x1000, scoped, tag = 'scratch operand']
  #allocation4 [shape = 'f32[8,128]{1,0:T(8,128)}', space=vmem, size = 0x1000, scoped, tag = 'scratch operand']
  #allocation5 [shape = 'f32[2,128]{1,0:T(2,128)}', space=vmem, size = 0x400, scoped, tag = 'scratch operand']
  #allocation6 [shape = 'f32[8,128]{1,0:T(8,128)}', space=vmem, size = 0x1000, scoped, tag = 'scratch operand']
  %s0 = inlined_call_operand.hbm [shape: f32[1,8,256], index: 0, kind: input, shape index: {}]
  %s1 = inlined_call_operand.hbm [shape: s32[1,2,256], index: 1, kind: input, shape index: {}]
  %s2 = inlined_call_operand.hbm [shape: f32[1,1,1], index: 2, kind: output, shape index: {}]
  %s3 = sld [smem:[#allocation0]]
  $region34: #{tpu_custom_call.1} parent=0
    _
  %s5 = ssub.s32 1, %s3
  %s6 = scalar_select 0, %s5, %s3
  $region1: #{tpu_custom_call.1} parent=0
    #allocation7 [shape = 'u8[8192]{0}', space=vmem, size = 0x2000, scoped, tag = 'input window, operand 0, single buffered']
    #allocation8 [shape = 's32[1]{0}', space=sflag, size = 0x4, scoped, tag = 'scoped memory for tpu_custom_call.1']
    #allocation9 [shape = 's32[1]{0}', space=sflag, size = 0x4, scoped, tag = 'scoped memory for tpu_custom_call.1']
    #allocation10 [shape = 'u8[2048]{0}', space=vmem, size = 0x800, scoped, tag = 'input window, operand 1, single buffered']
    #allocation11 [shape = 's32[1]{0}', space=sflag, size = 0x4, scoped, tag = 'scoped memory for tpu_custom_call.1']
    #allocation12 [shape = 'u8[512]{0}', space=vmem, size = 0x400, scoped, tag = 'output window, operand 0, single buffered']
    %7 = vsyncpa [#allocation8], 0
    %8 = vsyncpa [#allocation11], 0
    %9 = vsyncpa [#allocation9], 0
    // Predicated region
    $region2: #{tpu_custom_call.1} parent=1 // pred_check
      _
    $region3: #{tpu_custom_call.1} parent=1 // pred_check_branch
      %11 = sbr.rel (0) target = $region5
    $region4: #{tpu_custom_call.1} parent=1 // pred_region
      %s13 = ssub.s32 256, 256
      %14 = vsyncadd [#allocation8], %s13
      %s16 = sshll.u32 [#allocation7], 4
      %s17 = int_to_ptr.vmem [resolvable:$true] %s16
      %19 = dma.hbm_to_vmem [thread:$0]  %s0, 256, %s17, [#allocation8]
    $region5: #{tpu_custom_call.1} parent=1 // pred_fallthru
      _
    // Predicated region
    $region6: #{tpu_custom_call.1} parent=1 // pred_check
      _
    $region7: #{tpu_custom_call.1} parent=1 // pred_check_branch
      %21 = sbr.rel (0) target = $region9
    $region8: #{tpu_custom_call.1} parent=1 // pred_region
      %s23 = ssub.s32 64, 64
      %24 = vsyncadd [#allocation11], %s23
      %s26 = sshll.u32 [#allocation10], 4
      %s27 = int_to_ptr.vmem [resolvable:$true] %s26
      %29 = dma.hbm_to_vmem [thread:$0]  %s1, 64, %s27, [#allocation11]
    $region9: #{tpu_custom_call.1} parent=1 // pred_fallthru
      _
    // Predicated region
    $region10: #{tpu_custom_call.1} parent=1 // pred_check
      _
    $region11: #{tpu_custom_call.1} parent=1 // pred_check_branch
      %31 = sbr.rel (0) target = $region13
    $region12: #{tpu_custom_call.1} parent=1 // pred_region
      %32 = dma.done [#allocation8], 256
    $region13: #{tpu_custom_call.1} parent=1 // pred_fallthru
      _
    // Predicated region
    $region14: #{tpu_custom_call.1} parent=1 // pred_check
      _
    $region15: #{tpu_custom_call.1} parent=1 // pred_check_branch
      %34 = sbr.rel (0) target = $region17
    $region16: #{tpu_custom_call.1} parent=1 // pred_region
      %35 = dma.done [#allocation11], 64
    $region17: #{tpu_custom_call.1} parent=1 // pred_fallthru
      _
    %p36 = scmp.eq.s32.totalorder 0, 0
    // Predicated region
    $region18: #{tpu_custom_call.1} parent=1 // pred_check
      %p37 = pneg %p36
    $region19: #{tpu_custom_call.1} parent=1 // pred_check_branch
      %39 = sbr.rel (%p37) target = $region21
    $region20: #{tpu_custom_call.1} parent=1 // pred_region
      %40 = vst [vmem:[#allocation2] sm:$0xff] 0.0
      %41 = vst [vmem:[#allocation3] sm:$0xff] 0.0
      %42 = vst [vmem:[#allocation4] sm:$0xff] 0.0
      %43 = vst [vmem:[#allocation5] sm:$0x3] 0.0
      %44 = vst [vmem:[#allocation6] sm:$0xff] 0.0
    $region21: #{tpu_custom_call.1} parent=1 // pred_fallthru
      _
    %v45 = vld [vmem:[#allocation7] sm:$0xff]
    %v46 = vld [vmem:[#allocation7 + $0x8] sm:$0xff]
    %v47 = vld [vmem:[#allocation10] sm:$0xf]
    %v48 = vcvt.s32.f32 %v47
    %v49 = vlaneseq
    %v50 = vshrl.u32 %v49, 7
    %v51 = vcvt.s32.f32 %v50
    %vm52 = vcmp.lt.s32.totalorder %v50, 4
    %v53 = vsel %vm52, %v45, -inf
    %v54 = vsel %vm52, %v46, -inf
    %v55 = vrot.slane %v53, 4
    %v56 = vmax.f32 %v53, %v55
    %v57 = vrot.slane %v56, 2
    %v58 = vmax.f32 %v56, %v57
    %v59 = vrot.slane %v58, 1
    %v60 = vmax.f32 %v58, %v59
    %v61 = vrot.slane %v54, 4
    %v62 = vmax.f32 %v54, %v61
    %v63 = vrot.slane %v62, 2
    %v64 = vmax.f32 %v62, %v63
    %v65 = vrot.slane %v64, 1
    %v66 = vmax.f32 %v64, %v65
    %v67 = vsel %vm52, %v60, 0.0
    %v68 = vsel %vm52, %v66, 0.0
    %vm69 = vcmp.eq.s32.totalorder %v50, 0
    %v70 = vsel %vm69, %v60, 0.0
    %v71 = vsel %vm69, %v66, 0.0
    %vm72 = vcmp.ge.s32.totalorder %v50, 4
    %v73 = vsel %vm72, %v45, -inf
    %v74 = vsel %vm72, %v46, -inf
    %v75 = vrot.slane %v73, 4
    %v76 = vmax.f32 %v73, %v75
    %v77 = vrot.slane %v76, 2
    %v78 = vmax.f32 %v76, %v77
    %v79 = vrot.slane %v78, 1
    %v80 = vmax.f32 %v78, %v79
    %v81 = vrot.slane %v74, 4
    %v82 = vmax.f32 %v74, %v81
    %v83 = vrot.slane %v82, 2
    %v84 = vmax.f32 %v82, %v83
    %v85 = vrot.slane %v84, 1
    %v86 = vmax.f32 %v84, %v85
    %v87 = vsel %vm72, %v80, %v67
    %v88 = vsel %vm72, %v86, %v68
    %vm89 = vcmp.eq.s32.totalorder %v50, 1
    %v90 = vsel %vm89, %v80, %v70
    %v91 = vsel %vm89, %v86, %v71
    %v92 = vsub.f32 %v45, %v87
    %v93 = vsub.f32 %v46, %v88
    %v94 = vmul.f32 %v92, 1.442695
    %v95 = vpow.pop %v94
    %v96 = vmul.f32 %v93, 1.442695
    %v97 = vpow.pop %v96
    %v98 = vlaneseq
    %v99 = vand.u32 %v98, 127
    %v100 = vmul.u32 %v50, 4
    %vm101 = vcmp.ge.s32.totalorder %v99, %v100
    %v102 = vadd.s32 %v50, 1
    %v103 = vmul.u32 %v102, 4
    %vm104 = vcmp.lt.s32.totalorder %v99, %v103
    %vm105 = vmand %vm101, %vm104
    %v106 = vsel %vm105, 1, 0
    %v107 = vcvt.s32.f32 %v106
    %v108 = vmul.u32 %v99, 4
    %vm109 = vcmp.ge.s32.totalorder %v50, %v108
    %v110 = vadd.s32 %v99, 1
    %v111 = vmul.u32 %v110, 4
    %vm112 = vcmp.lt.s32.totalorder %v50, %v111
    %vm113 = vmand %vm109, %vm112
    %v114 = vsel %vm113, 1, 0
    %v115 = vcvt.s32.f32 %v114
    %vm116 = vcmask 64512
    %v118 = vsel %vm116, %v107, 0
    %120 = vmatprep.subr.mxu0 0.0
    %121 = vmatpush1.msra.mxu0 0.0
    %122 = vmatprep.subr.mxu0 0.0
    %123 = vmatpush1.msra.mxu0 0.0
    %124 = vmatprep.subr.mxu0 0.0
    %125 = vmatpush1.msra.mxu0 0.0
    %126 = vmatprep.subr.mxu0 0.0
    %127 = vmatpush1.msra.mxu0 0.0
    %128 = vmatprep.subr.mxu0 0.0
    %129 = vmatpush1.msra.mxu0 0.0
    %130 = vmatprep.subr.mxu0 0.0
    %131 = vmatpush1.msra.mxu0 0.0
    %132 = vmatprep.subr.mxu0 0.0
    %133 = vmatpush1.msra.mxu0 0.0
    %134 = vmatprep.subr.mxu0 0.0
    %135 = vmatpush1.msra.mxu0 0.0
    %136 = vmatprep.subr.mxu0 0.0
    %137 = vmatpush1.msra.mxu0 0.0
    %138 = vmatprep.subr.mxu0 0.0
    %139 = vmatpush1.msra.mxu0 0.0
    %140 = vmatprep.subr.mxu0 0.0
    %141 = vmatpush1.msra.mxu0 0.0
    %142 = vmatprep.subr.mxu0 0.0
    %143 = vmatpush1.msra.mxu0 0.0
    %144 = vmatprep.subr.mxu0 0.0
    %145 = vmatpush1.msra.mxu0 0.0
    %146 = vmatprep.subr.mxu0 0.0
    %147 = vmatpush1.msra.mxu0 0.0
    %148 = vmatprep.subr.mxu0 0.0
    %149 = vmatpush1.msra.mxu0 0.0
    %v150 = vand.u32 %v97, 4294901760
    %151 = vmatprep.subr.mxu0 %v150
    %v152 = vand.u32 %v95, 4294901760
    %153 = vmatpush1.msra.mxu0 %v152
    %154 = vmatprep.subr.mxu0 0.0
    %155 = vmatpush2.msra.mxu0 0.0
    %156 = vmatprep.subr.mxu0 0.0
    %157 = vmatpush2.msra.mxu0 0.0
    %158 = vmatprep.subr.mxu0 0.0
    %159 = vmatpush2.msra.mxu0 0.0
    %160 = vmatprep.subr.mxu0 0.0
    %161 = vmatpush2.msra.mxu0 0.0
    %162 = vmatprep.subr.mxu0 0.0
    %163 = vmatpush2.msra.mxu0 0.0
    %164 = vmatprep.subr.mxu0 0.0
    %165 = vmatpush2.msra.mxu0 0.0
    %166 = vmatprep.subr.mxu0 0.0
    %167 = vmatpush2.msra.mxu0 0.0
    %168 = vmatprep.subr.mxu0 0.0
    %169 = vmatpush2.msra.mxu0 0.0
    %170 = vmatprep.subr.mxu0 0.0
    %171 = vmatpush2.msra.mxu0 0.0
    %172 = vmatprep.subr.mxu0 0.0
    %173 = vmatpush2.msra.mxu0 0.0
    %174 = vmatprep.subr.mxu0 0.0
    %175 = vmatpush2.msra.mxu0 0.0
    %176 = vmatprep.subr.mxu0 0.0
    %177 = vmatpush2.msra.mxu0 0.0
    %178 = vmatprep.subr.mxu0 0.0
    %179 = vmatpush2.msra.mxu0 0.0
    %180 = vmatprep.subr.mxu0 0.0
    %181 = vmatpush2.msra.mxu0 0.0
    %182 = vmatprep.subr.mxu0 0.0
    %183 = vmatpush2.msra.mxu0 0.0
    %184 = vmatprep.subr.mxu0 0.0
    %185 = vmatpush2.msra.mxu0 0.0
    %186 = vmatprep.mubr.f32.mxu0 0.0
    %v187 = vand.u32 %v118, 4294901760
    %v188 = vsub.f32 %v118, %v187
    %v189 = vand.u32 %v188, 4294901760
    %v190 = vsub.f32 %v188, %v189
    %v191 = vand.u32 %v190, 4294901760
    %192 = vmatmul.mubr.f32.gmra.mxu0 %v191
    %v193 = vpop.f32.mrf.mxu0
    %v194 = vadd.f32 0.0, %v193
    %v195 = vpop.f32.mrf.mxu0
    %v196 = vadd.f32 0.0, %v195
    %197 = vdwg.mxu0
    %198 = vmatprep.subr.mxu0 0.0
    %199 = vmatpush1.msra.mxu0 0.0
    %200 = vmatprep.subr.mxu0 0.0
    %201 = vmatpush1.msra.mxu0 0.0
    %202 = vmatprep.subr.mxu0 0.0
    %203 = vmatpush1.msra.mxu0 0.0
    %204 = vmatprep.subr.mxu0 0.0
    %205 = vmatpush1.msra.mxu0 0.0
    %206 = vmatprep.subr.mxu0 0.0
    %207 = vmatpush1.msra.mxu0 0.0
    %208 = vmatprep.subr.mxu0 0.0
    %209 = vmatpush1.msra.mxu0 0.0
    %210 = vmatprep.subr.mxu0 0.0
    %211 = vmatpush1.msra.mxu0 0.0
    %212 = vmatprep.subr.mxu0 0.0
    %213 = vmatpush1.msra.mxu0 0.0
    %214 = vmatprep.subr.mxu0 0.0
    %215 = vmatpush1.msra.mxu0 0.0
    %216 = vmatprep.subr.mxu0 0.0
    %217 = vmatpush1.msra.mxu0 0.0
    %218 = vmatprep.subr.mxu0 0.0
    %219 = vmatpush1.msra.mxu0 0.0
    %220 = vmatprep.subr.mxu0 0.0
    %221 = vmatpush1.msra.mxu0 0.0
    %222 = vmatprep.subr.mxu0 0.0
    %223 = vmatpush1.msra.mxu0 0.0
    %224 = vmatprep.subr.mxu0 0.0
    %225 = vmatpush1.msra.mxu0 0.0
    %226 = vmatprep.subr.mxu0 0.0
    %227 = vmatpush1.msra.mxu0 0.0
    %v228 = vand.u32 %v97, 4294901760
    %v229 = vsub.f32 %v97, %v228
    %v230 = vand.u32 %v229, 4294901760
    %v231 = vsub.f32 %v229, %v230
    %v232 = vand.u32 %v231, 4294901760
    %233 = vmatprep.subr.mxu0 %v232
    %v234 = vand.u32 %v95, 4294901760
    %v235 = vsub.f32 %v95, %v234
    %v236 = vand.u32 %v235, 4294901760
    %v237 = vsub.f32 %v235, %v236
    %v238 = vand.u32 %v237, 4294901760
    %239 = vmatpush1.msra.mxu0 %v238
    %240 = vmatprep.subr.mxu0 0.0
    %241 = vmatpush2.msra.mxu0 0.0
    %242 = vmatprep.subr.mxu0 0.0
    %243 = vmatpush2.msra.mxu0 0.0
    %244 = vmatprep.subr.mxu0 0.0
    %245 = vmatpush2.msra.mxu0 0.0
    %246 = vmatprep.subr.mxu0 0.0
    %247 = vmatpush2.msra.mxu0 0.0
    %248 = vmatprep.subr.mxu0 0.0
    %249 = vmatpush2.msra.mxu0 0.0
    %250 = vmatprep.subr.mxu0 0.0
    %251 = vmatpush2.msra.mxu0 0.0
    %252 = vmatprep.subr.mxu0 0.0
    %253 = vmatpush2.msra.mxu0 0.0
    %254 = vmatprep.subr.mxu0 0.0
    %255 = vmatpush2.msra.mxu0 0.0
    %256 = vmatprep.subr.mxu0 0.0
    %257 = vmatpush2.msra.mxu0 0.0
    %258 = vmatprep.subr.mxu0 0.0
    %259 = vmatpush2.msra.mxu0 0.0
    %260 = vmatprep.subr.mxu0 0.0
    %261 = vmatpush2.msra.mxu0 0.0
    %262 = vmatprep.subr.mxu0 0.0
    %263 = vmatpush2.msra.mxu0 0.0
    %264 = vmatprep.subr.mxu0 0.0
    %265 = vmatpush2.msra.mxu0 0.0
    %266 = vmatprep.subr.mxu0 0.0
    %267 = vmatpush2.msra.mxu0 0.0
    %268 = vmatprep.subr.mxu0 0.0
    %269 = vmatpush2.msra.mxu0 0.0
    %270 = vmatprep.subr.mxu0 0.0
    %271 = vmatpush2.msra.mxu0 0.0
    %272 = vmatprep.mubr.f32.mxu0 0.0
    %v273 = vand.u32 %v118, 4294901760
    %274 = vmatmul.mubr.f32.gmra.mxu0 %v273
    %v275 = vpop.f32.mrf.mxu0
    %v276 = vadd.f32 %v194, %v275
    %v277 = vpop.f32.mrf.mxu0
    %v278 = vadd.f32 %v196, %v277
    %279 = vdwg.mxu0
    %280 = vmatprep.subr.mxu0 0.0
    %281 = vmatpush1.msra.mxu0 0.0
    %282 = vmatprep.subr.mxu0 0.0
    %283 = vmatpush1.msra.mxu0 0.0
    %284 = vmatprep.subr.mxu0 0.0
    %285 = vmatpush1.msra.mxu0 0.0
    %286 = vmatprep.subr.mxu0 0.0
    %287 = vmatpush1.msra.mxu0 0.0
    %288 = vmatprep.subr.mxu0 0.0
    %289 = vmatpush1.msra.mxu0 0.0
    %290 = vmatprep.subr.mxu0 0.0
    %291 = vmatpush1.msra.mxu0 0.0
    %292 = vmatprep.subr.mxu0 0.0
    %293 = vmatpush1.msra.mxu0 0.0
    %294 = vmatprep.subr.mxu0 0.0
    %295 = vmatpush1.msra.mxu0 0.0
    %296 = vmatprep.subr.mxu0 0.0
    %297 = vmatpush1.msra.mxu0 0.0
    %298 = vmatprep.subr.mxu0 0.0
    %299 = vmatpush1.msra.mxu0 0.0
    %300 = vmatprep.subr.mxu0 0.0
    %301 = vmatpush1.msra.mxu0 0.0
    %302 = vmatprep.subr.mxu0 0.0
    %303 = vmatpush1.msra.mxu0 0.0
    %304 = vmatprep.subr.mxu0 0.0
    %305 = vmatpush1.msra.mxu0 0.0
    %306 = vmatprep.subr.mxu0 0.0
    %307 = vmatpush1.msra.mxu0 0.0
    %308 = vmatprep.subr.mxu0 0.0
    %309 = vmatpush1.msra.mxu0 0.0
    %v310 = vand.u32 %v97, 4294901760
    %v311 = vsub.f32 %v97, %v310
    %312 = vmatprep.subr.mxu0 %v311
    %v313 = vand.u32 %v95, 4294901760
    %v314 = vsub.f32 %v95, %v313
    %315 = vmatpush1.msra.mxu0 %v314
    %316 = vmatprep.subr.mxu0 0.0
    %317 = vmatpush2.msra.mxu0 0.0
    %318 = vmatprep.subr.mxu0 0.0
    %319 = vmatpush2.msra.mxu0 0.0
    %320 = vmatprep.subr.mxu0 0.0
    %321 = vmatpush2.msra.mxu0 0.0
    %322 = vmatprep.subr.mxu0 0.0
    %323 = vmatpush2.msra.mxu0 0.0
    %324 = vmatprep.subr.mxu0 0.0
    %325 = vmatpush2.msra.mxu0 0.0
    %326 = vmatprep.subr.mxu0 0.0
    %327 = vmatpush2.msra.mxu0 0.0
    %328 = vmatprep.subr.mxu0 0.0
    %329 = vmatpush2.msra.mxu0 0.0
    %330 = vmatprep.subr.mxu0 0.0
    %331 = vmatpush2.msra.mxu0 0.0
    %332 = vmatprep.subr.mxu0 0.0
    %333 = vmatpush2.msra.mxu0 0.0
    %334 = vmatprep.subr.mxu0 0.0
    %335 = vmatpush2.msra.mxu0 0.0
    %336 = vmatprep.subr.mxu0 0.0
    %337 = vmatpush2.msra.mxu0 0.0
    %338 = vmatprep.subr.mxu0 0.0
    %339 = vmatpush2.msra.mxu0 0.0
    %340 = vmatprep.subr.mxu0 0.0
    %341 = vmatpush2.msra.mxu0 0.0
    %342 = vmatprep.subr.mxu0 0.0
    %343 = vmatpush2.msra.mxu0 0.0
    %344 = vmatprep.subr.mxu0 0.0
    %345 = vmatpush2.msra.mxu0 0.0
    %346 = vmatprep.subr.mxu0 0.0
    %347 = vmatpush2.msra.mxu0 0.0
    %348 = vmatprep.mubr.f32.mxu0 0.0
    %v349 = vand.u32 %v118, 4294901760
    %v350 = vsub.f32 %v118, %v349
    %351 = vmatmul.mubr.f32.gmra.mxu0 %v350
    %v352 = vpop.f32.mrf.mxu0
    %v353 = vadd.f32 %v276, %v352
    %v354 = vpop.f32.mrf.mxu0
    %v355 = vadd.f32 %v278, %v354
    %356 = vdwg.mxu0
    %357 = vmatprep.subr.mxu0 0.0
    %358 = vmatpush1.msra.mxu0 0.0
    %359 = vmatprep.subr.mxu0 0.0
    %360 = vmatpush1.msra.mxu0 0.0
    %361 = vmatprep.subr.mxu0 0.0
    %362 = vmatpush1.msra.mxu0 0.0
    %363 = vmatprep.subr.mxu0 0.0
    %364 = vmatpush1.msra.mxu0 0.0
    %365 = vmatprep.subr.mxu0 0.0
    %366 = vmatpush1.msra.mxu0 0.0
    %367 = vmatprep.subr.mxu0 0.0
    %368 = vmatpush1.msra.mxu0 0.0
    %369 = vmatprep.subr.mxu0 0.0
    %370 = vmatpush1.msra.mxu0 0.0
    %371 = vmatprep.subr.mxu0 0.0
    %372 = vmatpush1.msra.mxu0 0.0
    %373 = vmatprep.subr.mxu0 0.0
    %374 = vmatpush1.msra.mxu0 0.0
    %375 = vmatprep.subr.mxu0 0.0
    %376 = vmatpush1.msra.mxu0 0.0
    %377 = vmatprep.subr.mxu0 0.0
    %378 = vmatpush1.msra.mxu0 0.0
    %379 = vmatprep.subr.mxu0 0.0
    %380 = vmatpush1.msra.mxu0 0.0
    %381 = vmatprep.subr.mxu0 0.0
    %382 = vmatpush1.msra.mxu0 0.0
    %383 = vmatprep.subr.mxu0 0.0
    %384 = vmatpush1.msra.mxu0 0.0
    %385 = vmatprep.subr.mxu0 0.0
    %386 = vmatpush1.msra.mxu0 0.0
    %v387 = vand.u32 %v97, 4294901760
    %388 = vmatprep.subr.mxu0 %v387
    %v389 = vand.u32 %v95, 4294901760
    %390 = vmatpush1.msra.mxu0 %v389
    %391 = vmatprep.subr.mxu0 0.0
    %392 = vmatpush2.msra.mxu0 0.0
    %393 = vmatprep.subr.mxu0 0.0
    %394 = vmatpush2.msra.mxu0 0.0
    %395 = vmatprep.subr.mxu0 0.0
    %396 = vmatpush2.msra.mxu0 0.0
    %397 = vmatprep.subr.mxu0 0.0
    %398 = vmatpush2.msra.mxu0 0.0
    %399 = vmatprep.subr.mxu0 0.0
    %400 = vmatpush2.msra.mxu0 0.0
    %401 = vmatprep.subr.mxu0 0.0
    %402 = vmatpush2.msra.mxu0 0.0
    %403 = vmatprep.subr.mxu0 0.0
    %404 = vmatpush2.msra.mxu0 0.0
    %405 = vmatprep.subr.mxu0 0.0
    %406 = vmatpush2.msra.mxu0 0.0
    %407 = vmatprep.subr.mxu0 0.0
    %408 = vmatpush2.msra.mxu0 0.0
    %409 = vmatprep.subr.mxu0 0.0
    %410 = vmatpush2.msra.mxu0 0.0
    %411 = vmatprep.subr.mxu0 0.0
    %412 = vmatpush2.msra.mxu0 0.0
    %413 = vmatprep.subr.mxu0 0.0
    %414 = vmatpush2.msra.mxu0 0.0
    %415 = vmatprep.subr.mxu0 0.0
    %416 = vmatpush2.msra.mxu0 0.0
    %417 = vmatprep.subr.mxu0 0.0
    %418 = vmatpush2.msra.mxu0 0.0
    %419 = vmatprep.subr.mxu0 0.0
    %420 = vmatpush2.msra.mxu0 0.0
    %421 = vmatprep.subr.mxu0 0.0
    %422 = vmatpush2.msra.mxu0 0.0
    %423 = vmatprep.mubr.f32.mxu0 0.0
    %v424 = vand.u32 %v118, 4294901760
    %v425 = vsub.f32 %v118, %v424
    %v426 = vand.u32 %v425, 4294901760
    %427 = vmatmul.mubr.f32.gmra.mxu0 %v426
    %v428 = vpop.f32.mrf.mxu0
    %v429 = vadd.f32 %v353, %v428
    %v430 = vpop.f32.mrf.mxu0
    %v431 = vadd.f32 %v355, %v430
    %432 = vdwg.mxu0
    %433 = vmatprep.subr.mxu0 0.0
    %434 = vmatpush1.msra.mxu0 0.0
    %435 = vmatprep.subr.mxu0 0.0
    %436 = vmatpush1.msra.mxu0 0.0
    %437 = vmatprep.subr.mxu0 0.0
    %438 = vmatpush1.msra.mxu0 0.0
    %439 = vmatprep.subr.mxu0 0.0
    %440 = vmatpush1.msra.mxu0 0.0
    %441 = vmatprep.subr.mxu0 0.0
    %442 = vmatpush1.msra.mxu0 0.0
    %443 = vmatprep.subr.mxu0 0.0
    %444 = vmatpush1.msra.mxu0 0.0
    %445 = vmatprep.subr.mxu0 0.0
    %446 = vmatpush1.msra.mxu0 0.0
    %447 = vmatprep.subr.mxu0 0.0
    %448 = vmatpush1.msra.mxu0 0.0
    %449 = vmatprep.subr.mxu0 0.0
    %450 = vmatpush1.msra.mxu0 0.0
    %451 = vmatprep.subr.mxu0 0.0
    %452 = vmatpush1.msra.mxu0 0.0
    %453 = vmatprep.subr.mxu0 0.0
    %454 = vmatpush1.msra.mxu0 0.0
    %455 = vmatprep.subr.mxu0 0.0
    %456 = vmatpush1.msra.mxu0 0.0
    %457 = vmatprep.subr.mxu0 0.0
    %458 = vmatpush1.msra.mxu0 0.0
    %459 = vmatprep.subr.mxu0 0.0
    %460 = vmatpush1.msra.mxu0 0.0
    %461 = vmatprep.subr.mxu0 0.0
    %462 = vmatpush1.msra.mxu0 0.0
    %v463 = vand.u32 %v97, 4294901760
    %v464 = vsub.f32 %v97, %v463
    %v465 = vand.u32 %v464, 4294901760
    %466 = vmatprep.subr.mxu0 %v465
    %v467 = vand.u32 %v95, 4294901760
    %v468 = vsub.f32 %v95, %v467
    %v469 = vand.u32 %v468, 4294901760
    %470 = vmatpush1.msra.mxu0 %v469
    %471 = vmatprep.subr.mxu0 0.0
    %472 = vmatpush2.msra.mxu0 0.0
    %473 = vmatprep.subr.mxu0 0.0
    %474 = vmatpush2.msra.mxu0 0.0
    %475 = vmatprep.subr.mxu0 0.0
    %476 = vmatpush2.msra.mxu0 0.0
    %477 = vmatprep.subr.mxu0 0.0
    %478 = vmatpush2.msra.mxu0 0.0
    %479 = vmatprep.subr.mxu0 0.0
    %480 = vmatpush2.msra.mxu0 0.0
    %481 = vmatprep.subr.mxu0 0.0
    %482 = vmatpush2.msra.mxu0 0.0
    %483 = vmatprep.subr.mxu0 0.0
    %484 = vmatpush2.msra.mxu0 0.0
    %485 = vmatprep.subr.mxu0 0.0
    %486 = vmatpush2.msra.mxu0 0.0
    %487 = vmatprep.subr.mxu0 0.0
    %488 = vmatpush2.msra.mxu0 0.0
    %489 = vmatprep.subr.mxu0 0.0
    %490 = vmatpush2.msra.mxu0 0.0
    %491 = vmatprep.subr.mxu0 0.0
    %492 = vmatpush2.msra.mxu0 0.0
    %493 = vmatprep.subr.mxu0 0.0
    %494 = vmatpush2.msra.mxu0 0.0
    %495 = vmatprep.subr.mxu0 0.0
    %496 = vmatpush2.msra.mxu0 0.0
    %497 = vmatprep.subr.mxu0 0.0
    %498 = vmatpush2.msra.mxu0 0.0
    %499 = vmatprep.subr.mxu0 0.0
    %500 = vmatpush2.msra.mxu0 0.0
    %501 = vmatprep.subr.mxu0 0.0
    %502 = vmatpush2.msra.mxu0 0.0
    %503 = vmatprep.mubr.f32.mxu0 0.0
    %v504 = vand.u32 %v118, 4294901760
    %505 = vmatmul.mubr.f32.gmra.mxu0 %v504
    %v506 = vpop.f32.mrf.mxu0
    %v507 = vadd.f32 %v429, %v506
    %v508 = vpop.f32.mrf.mxu0
    %v509 = vadd.f32 %v431, %v508
    %510 = vdwg.mxu0
    %511 = vmatprep.subr.mxu0 0.0
    %512 = vmatpush1.msra.mxu0 0.0
    %513 = vmatprep.subr.mxu0 0.0
    %514 = vmatpush1.msra.mxu0 0.0
    %515 = vmatprep.subr.mxu0 0.0
    %516 = vmatpush1.msra.mxu0 0.0
    %517 = vmatprep.subr.mxu0 0.0
    %518 = vmatpush1.msra.mxu0 0.0
    %519 = vmatprep.subr.mxu0 0.0
    %520 = vmatpush1.msra.mxu0 0.0
    %521 = vmatprep.subr.mxu0 0.0
    %522 = vmatpush1.msra.mxu0 0.0
    %523 = vmatprep.subr.mxu0 0.0
    %524 = vmatpush1.msra.mxu0 0.0
    %525 = vmatprep.subr.mxu0 0.0
    %526 = vmatpush1.msra.mxu0 0.0
    %527 = vmatprep.subr.mxu0 0.0
    %528 = vmatpush1.msra.mxu0 0.0
    %529 = vmatprep.subr.mxu0 0.0
    %530 = vmatpush1.msra.mxu0 0.0
    %531 = vmatprep.subr.mxu0 0.0
    %532 = vmatpush1.msra.mxu0 0.0
    %533 = vmatprep.subr.mxu0 0.0
    %534 = vmatpush1.msra.mxu0 0.0
    %535 = vmatprep.subr.mxu0 0.0
    %536 = vmatpush1.msra.mxu0 0.0
    %537 = vmatprep.subr.mxu0 0.0
    %538 = vmatpush1.msra.mxu0 0.0
    %539 = vmatprep.subr.mxu0 0.0
    %540 = vmatpush1.msra.mxu0 0.0
    %v541 = vand.u32 %v97, 4294901760
    %542 = vmatprep.subr.mxu0 %v541
    %v543 = vand.u32 %v95, 4294901760
    %544 = vmatpush1.msra.mxu0 %v543
    %545 = vmatprep.subr.mxu0 0.0
    %546 = vmatpush2.msra.mxu0 0.0
    %547 = vmatprep.subr.mxu0 0.0
    %548 = vmatpush2.msra.mxu0 0.0
    %549 = vmatprep.subr.mxu0 0.0
    %550 = vmatpush2.msra.mxu0 0.0
    %551 = vmatprep.subr.mxu0 0.0
    %552 = vmatpush2.msra.mxu0 0.0
    %553 = vmatprep.subr.mxu0 0.0
    %554 = vmatpush2.msra.mxu0 0.0
    %555 = vmatprep.subr.mxu0 0.0
    %556 = vmatpush2.msra.mxu0 0.0
    %557 = vmatprep.subr.mxu0 0.0
    %558 = vmatpush2.msra.mxu0 0.0
    %559 = vmatprep.subr.mxu0 0.0
    %560 = vmatpush2.msra.mxu0 0.0
    %561 = vmatprep.subr.mxu0 0.0
    %562 = vmatpush2.msra.mxu0 0.0
    %563 = vmatprep.subr.mxu0 0.0
    %564 = vmatpush2.msra.mxu0 0.0
    %565 = vmatprep.subr.mxu0 0.0
    %566 = vmatpush2.msra.mxu0 0.0
    %567 = vmatprep.subr.mxu0 0.0
    %568 = vmatpush2.msra.mxu0 0.0
    %569 = vmatprep.subr.mxu0 0.0
    %570 = vmatpush2.msra.mxu0 0.0
    %571 = vmatprep.subr.mxu0 0.0
    %572 = vmatpush2.msra.mxu0 0.0
    %573 = vmatprep.subr.mxu0 0.0
    %574 = vmatpush2.msra.mxu0 0.0
    %575 = vmatprep.subr.mxu0 0.0
    %576 = vmatpush2.msra.mxu0 0.0
    %577 = vmatprep.mubr.f32.mxu0 0.0
    %v578 = vand.u32 %v118, 4294901760
    %579 = vmatmul.mubr.f32.gmra.mxu0 %v578
    %v580 = vpop.f32.mrf.mxu0
    %v581 = vadd.f32 %v507, %v580
    %v582 = vpop.f32.mrf.mxu0
    %v583 = vadd.f32 %v509, %v582
    %584 = vdwg.mxu0
    %v585 = vcvt.s32.f32 %v100
    %v588 = vunpack.c.l.s4 269488144
    %v589 = vunpack.c.0.s8 %v588
    %v590 = vlaneseq
    %v591 = vshrl.u32 %v590, 7
    %v592 = vsub.s32 %v589, %v591
    %v593 = vrot.slane %v585, %v592
    %v595 = vadd.f32 %v48, %v593
    %v598 = vunpack.c.l.s4 1983009808
    %v599 = vunpack.c.0.s8 %v598
    %v600 = vlaneseq
    %v601 = vshrl.u32 %v600, 7
    %v602 = vsub.s32 %v599, %v601
    %v603 = vrot.slane %v595, %v602
    %v604 = vcombine.high %v603, %v603
    %vm605 = vcmask 15360
    %v607 = vsel %vm605, %v115, 0
    %vm609 = vcmask 1041408
    %v610 = vsel %vm609, %v603, 0
    %v612 = vsel %vm609, %v604, 0
    %614 = vmatprep.subr.mxu0 0.0
    %615 = vmatpush1.msra.mxu0 0.0
    %616 = vmatprep.subr.mxu0 0.0
    %617 = vmatpush1.msra.mxu0 0.0
    %618 = vmatprep.subr.mxu0 0.0
    %619 = vmatpush1.msra.mxu0 0.0
    %620 = vmatprep.subr.mxu0 0.0
    %621 = vmatpush1.msra.mxu0 0.0
    %622 = vmatprep.subr.mxu0 0.0
    %623 = vmatpush1.msra.mxu0 0.0
    %624 = vmatprep.subr.mxu0 0.0
    %625 = vmatpush1.msra.mxu0 0.0
    %626 = vmatprep.subr.mxu0 0.0
    %627 = vmatpush1.msra.mxu0 0.0
    %628 = vmatprep.subr.mxu0 0.0
    %629 = vmatpush1.msra.mxu0 0.0
    %630 = vmatprep.subr.mxu0 0.0
    %631 = vmatpush1.msra.mxu0 0.0
    %632 = vmatprep.subr.mxu0 0.0
    %633 = vmatpush1.msra.mxu0 0.0
    %634 = vmatprep.subr.mxu0 0.0
    %635 = vmatpush1.msra.mxu0 0.0
    %636 = vmatprep.subr.mxu0 0.0
    %637 = vmatpush1.msra.mxu0 0.0
    %638 = vmatprep.subr.mxu0 0.0
    %639 = vmatpush1.msra.mxu0 0.0
    %640 = vmatprep.subr.mxu0 0.0
    %641 = vmatpush1.msra.mxu0 0.0
    %642 = vmatprep.subr.mxu0 0.0
    %643 = vmatpush1.msra.mxu0 0.0
    %v644 = vand.u32 %v612, 4294901760
    %645 = vmatprep.subr.mxu0 %v644
    %v646 = vand.u32 %v610, 4294901760
    %647 = vmatpush1.msra.mxu0 %v646
    %648 = vmatprep.subr.mxu0 0.0
    %649 = vmatpush2.msra.mxu0 0.0
    %650 = vmatprep.subr.mxu0 0.0
    %651 = vmatpush2.msra.mxu0 0.0
    %652 = vmatprep.subr.mxu0 0.0
    %653 = vmatpush2.msra.mxu0 0.0
    %654 = vmatprep.subr.mxu0 0.0
    %655 = vmatpush2.msra.mxu0 0.0
    %656 = vmatprep.subr.mxu0 0.0
    %657 = vmatpush2.msra.mxu0 0.0
    %658 = vmatprep.subr.mxu0 0.0
    %659 = vmatpush2.msra.mxu0 0.0
    %660 = vmatprep.subr.mxu0 0.0
    %661 = vmatpush2.msra.mxu0 0.0
    %662 = vmatprep.subr.mxu0 0.0
    %663 = vmatpush2.msra.mxu0 0.0
    %664 = vmatprep.subr.mxu0 0.0
    %665 = vmatpush2.msra.mxu0 0.0
    %666 = vmatprep.subr.mxu0 0.0
    %667 = vmatpush2.msra.mxu0 0.0
    %668 = vmatprep.subr.mxu0 0.0
    %669 = vmatpush2.msra.mxu0 0.0
    %670 = vmatprep.subr.mxu0 0.0
    %671 = vmatpush2.msra.mxu0 0.0
    %672 = vmatprep.subr.mxu0 0.0
    %673 = vmatpush2.msra.mxu0 0.0
    %674 = vmatprep.subr.mxu0 0.0
    %675 = vmatpush2.msra.mxu0 0.0
    %676 = vmatprep.subr.mxu0 0.0
    %677 = vmatpush2.msra.mxu0 0.0
    %678 = vmatprep.subr.mxu0 0.0
    %679 = vmatpush2.msra.mxu0 0.0
    %680 = vmatprep.mubr.f32.mxu0 0.0
    %v681 = vand.u32 %v607, 4294901760
    %v682 = vsub.f32 %v607, %v681
    %v683 = vand.u32 %v682, 4294901760
    %v684 = vsub.f32 %v682, %v683
    %v685 = vand.u32 %v684, 4294901760
    %686 = vmatmul.mubr.f32.gmra.mxu0 %v685
    %v687 = vpop.f32.mrf.mxu0
    %v688 = vadd.f32 0.0, %v687
    %v689 = vpop.f32.mrf.mxu0
    %v690 = vadd.f32 0.0, %v689
    %691 = vdwg.mxu0
    %692 = vmatprep.subr.mxu0 0.0
    %693 = vmatpush1.msra.mxu0 0.0
    %694 = vmatprep.subr.mxu0 0.0
    %695 = vmatpush1.msra.mxu0 0.0
    %696 = vmatprep.subr.mxu0 0.0
    %697 = vmatpush1.msra.mxu0 0.0
    %698 = vmatprep.subr.mxu0 0.0
    %699 = vmatpush1.msra.mxu0 0.0
    %700 = vmatprep.subr.mxu0 0.0
    %701 = vmatpush1.msra.mxu0 0.0
    %702 = vmatprep.subr.mxu0 0.0
    %703 = vmatpush1.msra.mxu0 0.0
    %704 = vmatprep.subr.mxu0 0.0
    %705 = vmatpush1.msra.mxu0 0.0
    %706 = vmatprep.subr.mxu0 0.0
    %707 = vmatpush1.msra.mxu0 0.0
    %708 = vmatprep.subr.mxu0 0.0
    %709 = vmatpush1.msra.mxu0 0.0
    %710 = vmatprep.subr.mxu0 0.0
    %711 = vmatpush1.msra.mxu0 0.0
    %712 = vmatprep.subr.mxu0 0.0
    %713 = vmatpush1.msra.mxu0 0.0
    %714 = vmatprep.subr.mxu0 0.0
    %715 = vmatpush1.msra.mxu0 0.0
    %716 = vmatprep.subr.mxu0 0.0
    %717 = vmatpush1.msra.mxu0 0.0
    %718 = vmatprep.subr.mxu0 0.0
    %719 = vmatpush1.msra.mxu0 0.0
    %720 = vmatprep.subr.mxu0 0.0
    %721 = vmatpush1.msra.mxu0 0.0
    %v722 = vand.u32 %v612, 4294901760
    %v723 = vsub.f32 %v612, %v722
    %v724 = vand.u32 %v723, 4294901760
    %v725 = vsub.f32 %v723, %v724
    %v726 = vand.u32 %v725, 4294901760
    %727 = vmatprep.subr.mxu0 %v726
    %v728 = vand.u32 %v610, 4294901760
    %v729 = vsub.f32 %v610, %v728
    %v730 = vand.u32 %v729, 4294901760
    %v731 = vsub.f32 %v729, %v730
    %v732 = vand.u32 %v731, 4294901760
    %733 = vmatpush1.msra.mxu0 %v732
    %734 = vmatprep.subr.mxu0 0.0
    %735 = vmatpush2.msra.mxu0 0.0
    %736 = vmatprep.subr.mxu0 0.0
    %737 = vmatpush2.msra.mxu0 0.0
    %738 = vmatprep.subr.mxu0 0.0
    %739 = vmatpush2.msra.mxu0 0.0
    %740 = vmatprep.subr.mxu0 0.0
    %741 = vmatpush2.msra.mxu0 0.0
    %742 = vmatprep.subr.mxu0 0.0
    %743 = vmatpush2.msra.mxu0 0.0
    %744 = vmatprep.subr.mxu0 0.0
    %745 = vmatpush2.msra.mxu0 0.0
    %746 = vmatprep.subr.mxu0 0.0
    %747 = vmatpush2.msra.mxu0 0.0
    %748 = vmatprep.subr.mxu0 0.0
    %749 = vmatpush2.msra.mxu0 0.0
    %750 = vmatprep.subr.mxu0 0.0
    %751 = vmatpush2.msra.mxu0 0.0
    %752 = vmatprep.subr.mxu0 0.0
    %753 = vmatpush2.msra.mxu0 0.0
    %754 = vmatprep.subr.mxu0 0.0
    %755 = vmatpush2.msra.mxu0 0.0
    %756 = vmatprep.subr.mxu0 0.0
    %757 = vmatpush2.msra.mxu0 0.0
    %758 = vmatprep.subr.mxu0 0.0
    %759 = vmatpush2.msra.mxu0 0.0
    %760 = vmatprep.subr.mxu0 0.0
    %761 = vmatpush2.msra.mxu0 0.0
    %762 = vmatprep.subr.mxu0 0.0
    %763 = vmatpush2.msra.mxu0 0.0
    %764 = vmatprep.subr.mxu0 0.0
    %765 = vmatpush2.msra.mxu0 0.0
    %766 = vmatprep.mubr.f32.mxu0 0.0
    %v767 = vand.u32 %v607, 4294901760
    %768 = vmatmul.mubr.f32.gmra.mxu0 %v767
    %v769 = vpop.f32.mrf.mxu0
    %v770 = vadd.f32 %v688, %v769
    %v771 = vpop.f32.mrf.mxu0
    %v772 = vadd.f32 %v690, %v771
    %773 = vdwg.mxu0
    %774 = vmatprep.subr.mxu0 0.0
    %775 = vmatpush1.msra.mxu0 0.0
    %776 = vmatprep.subr.mxu0 0.0
    %777 = vmatpush1.msra.mxu0 0.0
    %778 = vmatprep.subr.mxu0 0.0
    %779 = vmatpush1.msra.mxu0 0.0
    %780 = vmatprep.subr.mxu0 0.0
    %781 = vmatpush1.msra.mxu0 0.0
    %782 = vmatprep.subr.mxu0 0.0
    %783 = vmatpush1.msra.mxu0 0.0
    %784 = vmatprep.subr.mxu0 0.0
    %785 = vmatpush1.msra.mxu0 0.0
    %786 = vmatprep.subr.mxu0 0.0
    %787 = vmatpush1.msra.mxu0 0.0
    %788 = vmatprep.subr.mxu0 0.0
    %789 = vmatpush1.msra.mxu0 0.0
    %790 = vmatprep.subr.mxu0 0.0
    %791 = vmatpush1.msra.mxu0 0.0
    %792 = vmatprep.subr.mxu0 0.0
    %793 = vmatpush1.msra.mxu0 0.0
    %794 = vmatprep.subr.mxu0 0.0
    %795 = vmatpush1.msra.mxu0 0.0
    %796 = vmatprep.subr.mxu0 0.0
    %797 = vmatpush1.msra.mxu0 0.0
    %798 = vmatprep.subr.mxu0 0.0
    %799 = vmatpush1.msra.mxu0 0.0
    %800 = vmatprep.subr.mxu0 0.0
    %801 = vmatpush1.msra.mxu0 0.0
    %802 = vmatprep.subr.mxu0 0.0
    %803 = vmatpush1.msra.mxu0 0.0
    %v804 = vand.u32 %v612, 4294901760
    %v805 = vsub.f32 %v612, %v804
    %806 = vmatprep.subr.mxu0 %v805
    %v807 = vand.u32 %v610, 4294901760
    %v808 = vsub.f32 %v610, %v807
    %809 = vmatpush1.msra.mxu0 %v808
    %810 = vmatprep.subr.mxu0 0.0
    %811 = vmatpush2.msra.mxu0 0.0
    %812 = vmatprep.subr.mxu0 0.0
    %813 = vmatpush2.msra.mxu0 0.0
    %814 = vmatprep.subr.mxu0 0.0
    %815 = vmatpush2.msra.mxu0 0.0
    %816 = vmatprep.subr.mxu0 0.0
    %817 = vmatpush2.msra.mxu0 0.0
    %818 = vmatprep.subr.mxu0 0.0
    %819 = vmatpush2.msra.mxu0 0.0
    %820 = vmatprep.subr.mxu0 0.0
    %821 = vmatpush2.msra.mxu0 0.0
    %822 = vmatprep.subr.mxu0 0.0
    %823 = vmatpush2.msra.mxu0 0.0
    %824 = vmatprep.subr.mxu0 0.0
    %825 = vmatpush2.msra.mxu0 0.0
    %826 = vmatprep.subr.mxu0 0.0
    %827 = vmatpush2.msra.mxu0 0.0
    %828 = vmatprep.subr.mxu0 0.0
    %829 = vmatpush2.msra.mxu0 0.0
    %830 = vmatprep.subr.mxu0 0.0
    %831 = vmatpush2.msra.mxu0 0.0
    %832 = vmatprep.subr.mxu0 0.0
    %833 = vmatpush2.msra.mxu0 0.0
    %834 = vmatprep.subr.mxu0 0.0
    %835 = vmatpush2.msra.mxu0 0.0
    %836 = vmatprep.subr.mxu0 0.0
    %837 = vmatpush2.msra.mxu0 0.0
    %838 = vmatprep.subr.mxu0 0.0
    %839 = vmatpush2.msra.mxu0 0.0
    %840 = vmatprep.subr.mxu0 0.0
    %841 = vmatpush2.msra.mxu0 0.0
    %842 = vmatprep.mubr.f32.mxu0 0.0
    %v843 = vand.u32 %v607, 4294901760
    %v844 = vsub.f32 %v607, %v843
    %845 = vmatmul.mubr.f32.gmra.mxu0 %v844
    %v846 = vpop.f32.mrf.mxu0
    %v847 = vadd.f32 %v770, %v846
    %v848 = vpop.f32.mrf.mxu0
    %v849 = vadd.f32 %v772, %v848
    %850 = vdwg.mxu0
    %851 = vmatprep.subr.mxu0 0.0
    %852 = vmatpush1.msra.mxu0 0.0
    %853 = vmatprep.subr.mxu0 0.0
    %854 = vmatpush1.msra.mxu0 0.0
    %855 = vmatprep.subr.mxu0 0.0
    %856 = vmatpush1.msra.mxu0 0.0
    %857 = vmatprep.subr.mxu0 0.0
    %858 = vmatpush1.msra.mxu0 0.0
    %859 = vmatprep.subr.mxu0 0.0
    %860 = vmatpush1.msra.mxu0 0.0
    %861 = vmatprep.subr.mxu0 0.0
    %862 = vmatpush1.msra.mxu0 0.0
    %863 = vmatprep.subr.mxu0 0.0
    %864 = vmatpush1.msra.mxu0 0.0
    %865 = vmatprep.subr.mxu0 0.0
    %866 = vmatpush1.msra.mxu0 0.0
    %867 = vmatprep.subr.mxu0 0.0
    %868 = vmatpush1.msra.mxu0 0.0
    %869 = vmatprep.subr.mxu0 0.0
    %870 = vmatpush1.msra.mxu0 0.0
    %871 = vmatprep.subr.mxu0 0.0
    %872 = vmatpush1.msra.mxu0 0.0
    %873 = vmatprep.subr.mxu0 0.0
    %874 = vmatpush1.msra.mxu0 0.0
    %875 = vmatprep.subr.mxu0 0.0
    %876 = vmatpush1.msra.mxu0 0.0
    %877 = vmatprep.subr.mxu0 0.0
    %878 = vmatpush1.msra.mxu0 0.0
    %879 = vmatprep.subr.mxu0 0.0
    %880 = vmatpush1.msra.mxu0 0.0
    %v881 = vand.u32 %v612, 4294901760
    %882 = vmatprep.subr.mxu0 %v881
    %v883 = vand.u32 %v610, 4294901760
    %884 = vmatpush1.msra.mxu0 %v883
    %885 = vmatprep.subr.mxu0 0.0
    %886 = vmatpush2.msra.mxu0 0.0
    %887 = vmatprep.subr.mxu0 0.0
    %888 = vmatpush2.msra.mxu0 0.0
    %889 = vmatprep.subr.mxu0 0.0
    %890 = vmatpush2.msra.mxu0 0.0
    %891 = vmatprep.subr.mxu0 0.0
    %892 = vmatpush2.msra.mxu0 0.0
    %893 = vmatprep.subr.mxu0 0.0
    %894 = vmatpush2.msra.mxu0 0.0
    %895 = vmatprep.subr.mxu0 0.0
    %896 = vmatpush2.msra.mxu0 0.0
    %897 = vmatprep.subr.mxu0 0.0
    %898 = vmatpush2.msra.mxu0 0.0
    %899 = vmatprep.subr.mxu0 0.0
    %900 = vmatpush2.msra.mxu0 0.0
    %901 = vmatprep.subr.mxu0 0.0
    %902 = vmatpush2.msra.mxu0 0.0
    %903 = vmatprep.subr.mxu0 0.0
    %904 = vmatpush2.msra.mxu0 0.0
    %905 = vmatprep.subr.mxu0 0.0
    %906 = vmatpush2.msra.mxu0 0.0
    %907 = vmatprep.subr.mxu0 0.0
    %908 = vmatpush2.msra.mxu0 0.0
    %909 = vmatprep.subr.mxu0 0.0
    %910 = vmatpush2.msra.mxu0 0.0
    %911 = vmatprep.subr.mxu0 0.0
    %912 = vmatpush2.msra.mxu0 0.0
    %913 = vmatprep.subr.mxu0 0.0
    %914 = vmatpush2.msra.mxu0 0.0
    %915 = vmatprep.subr.mxu0 0.0
    %916 = vmatpush2.msra.mxu0 0.0
    %917 = vmatprep.mubr.f32.mxu0 0.0
    %v918 = vand.u32 %v607, 4294901760
    %v919 = vsub.f32 %v607, %v918
    %v920 = vand.u32 %v919, 4294901760
    %921 = vmatmul.mubr.f32.gmra.mxu0 %v920
    %v922 = vpop.f32.mrf.mxu0
    %v923 = vadd.f32 %v847, %v922
    %v924 = vpop.f32.mrf.mxu0
    %v925 = vadd.f32 %v849, %v924
    %926 = vdwg.mxu0
    %927 = vmatprep.subr.mxu0 0.0
    %928 = vmatpush1.msra.mxu0 0.0
    %929 = vmatprep.subr.mxu0 0.0
    %930 = vmatpush1.msra.mxu0 0.0
    %931 = vmatprep.subr.mxu0 0.0
    %932 = vmatpush1.msra.mxu0 0.0
    %933 = vmatprep.subr.mxu0 0.0
    %934 = vmatpush1.msra.mxu0 0.0
    %935 = vmatprep.subr.mxu0 0.0
    %936 = vmatpush1.msra.mxu0 0.0
    %937 = vmatprep.subr.mxu0 0.0
    %938 = vmatpush1.msra.mxu0 0.0
    %939 = vmatprep.subr.mxu0 0.0
    %940 = vmatpush1.msra.mxu0 0.0
    %941 = vmatprep.subr.mxu0 0.0
    %942 = vmatpush1.msra.mxu0 0.0
    %943 = vmatprep.subr.mxu0 0.0
    %944 = vmatpush1.msra.mxu0 0.0
    %945 = vmatprep.subr.mxu0 0.0
    %946 = vmatpush1.msra.mxu0 0.0
    %947 = vmatprep.subr.mxu0 0.0
    %948 = vmatpush1.msra.mxu0 0.0
    %949 = vmatprep.subr.mxu0 0.0
    %950 = vmatpush1.msra.mxu0 0.0
    %951 = vmatprep.subr.mxu0 0.0
    %952 = vmatpush1.msra.mxu0 0.0
    %953 = vmatprep.subr.mxu0 0.0
    %954 = vmatpush1.msra.mxu0 0.0
    %955 = vmatprep.subr.mxu0 0.0
    %956 = vmatpush1.msra.mxu0 0.0
    %v957 = vand.u32 %v612, 4294901760
    %v958 = vsub.f32 %v612, %v957
    %v959 = vand.u32 %v958, 4294901760
    %960 = vmatprep.subr.mxu0 %v959
    %v961 = vand.u32 %v610, 4294901760
    %v962 = vsub.f32 %v610, %v961
    %v963 = vand.u32 %v962, 4294901760
    %964 = vmatpush1.msra.mxu0 %v963
    %965 = vmatprep.subr.mxu0 0.0
    %966 = vmatpush2.msra.mxu0 0.0
    %967 = vmatprep.subr.mxu0 0.0
    %968 = vmatpush2.msra.mxu0 0.0
    %969 = vmatprep.subr.mxu0 0.0
    %970 = vmatpush2.msra.mxu0 0.0
    %971 = vmatprep.subr.mxu0 0.0
    %972 = vmatpush2.msra.mxu0 0.0
    %973 = vmatprep.subr.mxu0 0.0
    %974 = vmatpush2.msra.mxu0 0.0
    %975 = vmatprep.subr.mxu0 0.0
    %976 = vmatpush2.msra.mxu0 0.0
    %977 = vmatprep.subr.mxu0 0.0
    %978 = vmatpush2.msra.mxu0 0.0
    %979 = vmatprep.subr.mxu0 0.0
    %980 = vmatpush2.msra.mxu0 0.0
    %981 = vmatprep.subr.mxu0 0.0
    %982 = vmatpush2.msra.mxu0 0.0
    %983 = vmatprep.subr.mxu0 0.0
    %984 = vmatpush2.msra.mxu0 0.0
    %985 = vmatprep.subr.mxu0 0.0
    %986 = vmatpush2.msra.mxu0 0.0
    %987 = vmatprep.subr.mxu0 0.0
    %988 = vmatpush2.msra.mxu0 0.0
    %989 = vmatprep.subr.mxu0 0.0
    %990 = vmatpush2.msra.mxu0 0.0
    %991 = vmatprep.subr.mxu0 0.0
    %992 = vmatpush2.msra.mxu0 0.0
    %993 = vmatprep.subr.mxu0 0.0
    %994 = vmatpush2.msra.mxu0 0.0
    %995 = vmatprep.subr.mxu0 0.0
    %996 = vmatpush2.msra.mxu0 0.0
    %997 = vmatprep.mubr.f32.mxu0 0.0
    %v998 = vand.u32 %v607, 4294901760
    %999 = vmatmul.mubr.f32.gmra.mxu0 %v998
    %v1000 = vpop.f32.mrf.mxu0
    %v1001 = vadd.f32 %v923, %v1000
    %v1002 = vpop.f32.mrf.mxu0
    %v1003 = vadd.f32 %v925, %v1002
    %1004 = vdwg.mxu0
    %1005 = vmatprep.subr.mxu0 0.0
    %1006 = vmatpush1.msra.mxu0 0.0
    %1007 = vmatprep.subr.mxu0 0.0
    %1008 = vmatpush1.msra.mxu0 0.0
    %1009 = vmatprep.subr.mxu0 0.0
    %1010 = vmatpush1.msra.mxu0 0.0
    %1011 = vmatprep.subr.mxu0 0.0
    %1012 = vmatpush1.msra.mxu0 0.0
    %1013 = vmatprep.subr.mxu0 0.0
    %1014 = vmatpush1.msra.mxu0 0.0
    %1015 = vmatprep.subr.mxu0 0.0
    %1016 = vmatpush1.msra.mxu0 0.0
    %1017 = vmatprep.subr.mxu0 0.0
    %1018 = vmatpush1.msra.mxu0 0.0
    %1019 = vmatprep.subr.mxu0 0.0
    %1020 = vmatpush1.msra.mxu0 0.0
    %1021 = vmatprep.subr.mxu0 0.0
    %1022 = vmatpush1.msra.mxu0 0.0
    %1023 = vmatprep.subr.mxu0 0.0
    %1024 = vmatpush1.msra.mxu0 0.0
    %1025 = vmatprep.subr.mxu0 0.0
    %1026 = vmatpush1.msra.mxu0 0.0
    %1027 = vmatprep.subr.mxu0 0.0
    %1028 = vmatpush1.msra.mxu0 0.0
    %1029 = vmatprep.subr.mxu0 0.0
    %1030 = vmatpush1.msra.mxu0 0.0
    %1031 = vmatprep.subr.mxu0 0.0
    %1032 = vmatpush1.msra.mxu0 0.0
    %1033 = vmatprep.subr.mxu0 0.0
    %1034 = vmatpush1.msra.mxu0 0.0
    %v1035 = vand.u32 %v612, 4294901760
    %1036 = vmatprep.subr.mxu0 %v1035
    %v1037 = vand.u32 %v610, 4294901760
    %1038 = vmatpush1.msra.mxu0 %v1037
    %1039 = vmatprep.subr.mxu0 0.0
    %1040 = vmatpush2.msra.mxu0 0.0
    %1041 = vmatprep.subr.mxu0 0.0
    %1042 = vmatpush2.msra.mxu0 0.0
    %1043 = vmatprep.subr.mxu0 0.0
    %1044 = vmatpush2.msra.mxu0 0.0
    %1045 = vmatprep.subr.mxu0 0.0
    %1046 = vmatpush2.msra.mxu0 0.0
    %1047 = vmatprep.subr.mxu0 0.0
    %1048 = vmatpush2.msra.mxu0 0.0
    %1049 = vmatprep.subr.mxu0 0.0
    %1050 = vmatpush2.msra.mxu0 0.0
    %1051 = vmatprep.subr.mxu0 0.0
    %1052 = vmatpush2.msra.mxu0 0.0
    %1053 = vmatprep.subr.mxu0 0.0
    %1054 = vmatpush2.msra.mxu0 0.0
    %1055 = vmatprep.subr.mxu0 0.0
    %1056 = vmatpush2.msra.mxu0 0.0
    %1057 = vmatprep.subr.mxu0 0.0
    %1058 = vmatpush2.msra.mxu0 0.0
    %1059 = vmatprep.subr.mxu0 0.0
    %1060 = vmatpush2.msra.mxu0 0.0
    %1061 = vmatprep.subr.mxu0 0.0
    %1062 = vmatpush2.msra.mxu0 0.0
    %1063 = vmatprep.subr.mxu0 0.0
    %1064 = vmatpush2.msra.mxu0 0.0
    %1065 = vmatprep.subr.mxu0 0.0
    %1066 = vmatpush2.msra.mxu0 0.0
    %1067 = vmatprep.subr.mxu0 0.0
    %1068 = vmatpush2.msra.mxu0 0.0
    %1069 = vmatprep.subr.mxu0 0.0
    %1070 = vmatpush2.msra.mxu0 0.0
    %1071 = vmatprep.mubr.f32.mxu0 0.0
    %v1072 = vand.u32 %v607, 4294901760
    %1073 = vmatmul.mubr.f32.gmra.mxu0 %v1072
    %v1074 = vpop.f32.mrf.mxu0
    %v1075 = vadd.f32 %v1001, %v1074
    %v1076 = vpop.f32.mrf.mxu0
    %v1077 = vadd.f32 %v1003, %v1076
    %1078 = vdwg.mxu0
    %v1079 = vrcp.pop %v581
    %v1080 = vrcp.pop %v583
    %v1081 = vmul.f32 %v581, %v1079
    %v1082 = vmul.f32 %v583, %v1080
    %v1083 = vsub.f32 2.0, %v1081
    %v1084 = vsub.f32 2.0, %v1082
    %v1085 = vmul.f32 %v1079, %v1083
    %v1086 = vmul.f32 %v1080, %v1084
    %v1087 = vlog2.pop %v581
    %v1088 = vmul.f32 %v1087, 0.6931472
    %v1089 = vlog2.pop %v583
    %v1090 = vmul.f32 %v1089, 0.6931472
    %v1091 = vadd.f32 %v1088, %v90
    %v1092 = vadd.f32 %v1090, %v91
    %v1094 = vsel %vm609, %v1085, 0
    %v1097 = vsel %vm609, %v1086, 0
    %1099 = vmatprep.subr.mxu0 0.0
    %1100 = vmatpush1.msra.mxu0 0.0
    %1101 = vmatprep.subr.mxu0 0.0
    %1102 = vmatpush1.msra.mxu0 0.0
    %1103 = vmatprep.subr.mxu0 0.0
    %1104 = vmatpush1.msra.mxu0 0.0
    %1105 = vmatprep.subr.mxu0 0.0
    %1106 = vmatpush1.msra.mxu0 0.0
    %1107 = vmatprep.subr.mxu0 0.0
    %1108 = vmatpush1.msra.mxu0 0.0
    %1109 = vmatprep.subr.mxu0 0.0
    %1110 = vmatpush1.msra.mxu0 0.0
    %1111 = vmatprep.subr.mxu0 0.0
    %1112 = vmatpush1.msra.mxu0 0.0
    %1113 = vmatprep.subr.mxu0 0.0
    %1114 = vmatpush1.msra.mxu0 0.0
    %1115 = vmatprep.subr.mxu0 0.0
    %1116 = vmatpush1.msra.mxu0 0.0
    %1117 = vmatprep.subr.mxu0 0.0
    %1118 = vmatpush1.msra.mxu0 0.0
    %1119 = vmatprep.subr.mxu0 0.0
    %1120 = vmatpush1.msra.mxu0 0.0
    %1121 = vmatprep.subr.mxu0 0.0
    %1122 = vmatpush1.msra.mxu0 0.0
    %1123 = vmatprep.subr.mxu0 0.0
    %1124 = vmatpush1.msra.mxu0 0.0
    %1125 = vmatprep.subr.mxu0 0.0
    %1126 = vmatpush1.msra.mxu0 0.0
    %1127 = vmatprep.subr.mxu0 0.0
    %1128 = vmatpush1.msra.mxu0 0.0
    %v1129 = vand.u32 %v1097, 4294901760
    %1130 = vmatprep.subr.mxu0 %v1129
    %v1131 = vand.u32 %v1094, 4294901760
    %1132 = vmatpush1.msra.mxu0 %v1131
    %1133 = vmatprep.subr.mxu0 0.0
    %1134 = vmatpush2.msra.mxu0 0.0
    %1135 = vmatprep.subr.mxu0 0.0
    %1136 = vmatpush2.msra.mxu0 0.0
    %1137 = vmatprep.subr.mxu0 0.0
    %1138 = vmatpush2.msra.mxu0 0.0
    %1139 = vmatprep.subr.mxu0 0.0
    %1140 = vmatpush2.msra.mxu0 0.0
    %1141 = vmatprep.subr.mxu0 0.0
    %1142 = vmatpush2.msra.mxu0 0.0
    %1143 = vmatprep.subr.mxu0 0.0
    %1144 = vmatpush2.msra.mxu0 0.0
    %1145 = vmatprep.subr.mxu0 0.0
    %1146 = vmatpush2.msra.mxu0 0.0
    %1147 = vmatprep.subr.mxu0 0.0
    %1148 = vmatpush2.msra.mxu0 0.0
    %1149 = vmatprep.subr.mxu0 0.0
    %1150 = vmatpush2.msra.mxu0 0.0
    %1151 = vmatprep.subr.mxu0 0.0
    %1152 = vmatpush2.msra.mxu0 0.0
    %1153 = vmatprep.subr.mxu0 0.0
    %1154 = vmatpush2.msra.mxu0 0.0
    %1155 = vmatprep.subr.mxu0 0.0
    %1156 = vmatpush2.msra.mxu0 0.0
    %1157 = vmatprep.subr.mxu0 0.0
    %1158 = vmatpush2.msra.mxu0 0.0
    %1159 = vmatprep.subr.mxu0 0.0
    %1160 = vmatpush2.msra.mxu0 0.0
    %1161 = vmatprep.subr.mxu0 0.0
    %1162 = vmatpush2.msra.mxu0 0.0
    %1163 = vmatprep.subr.mxu0 0.0
    %1164 = vmatpush2.msra.mxu0 0.0
    %1165 = vmatprep.mubr.f32.mxu0 0.0
    %v1166 = vand.u32 %v607, 4294901760
    %v1167 = vsub.f32 %v607, %v1166
    %v1168 = vand.u32 %v1167, 4294901760
    %v1169 = vsub.f32 %v1167, %v1168
    %v1170 = vand.u32 %v1169, 4294901760
    %1171 = vmatmul.mubr.f32.gmra.mxu0 %v1170
    %v1172 = vpop.f32.mrf.mxu0
    %v1173 = vadd.f32 0.0, %v1172
    %v1174 = vpop.f32.mrf.mxu0
    %v1175 = vadd.f32 0.0, %v1174
    %1176 = vdwg.mxu0
    %1177 = vmatprep.subr.mxu0 0.0
    %1178 = vmatpush1.msra.mxu0 0.0
    %1179 = vmatprep.subr.mxu0 0.0
    %1180 = vmatpush1.msra.mxu0 0.0
    %1181 = vmatprep.subr.mxu0 0.0
    %1182 = vmatpush1.msra.mxu0 0.0
    %1183 = vmatprep.subr.mxu0 0.0
    %1184 = vmatpush1.msra.mxu0 0.0
    %1185 = vmatprep.subr.mxu0 0.0
    %1186 = vmatpush1.msra.mxu0 0.0
    %1187 = vmatprep.subr.mxu0 0.0
    %1188 = vmatpush1.msra.mxu0 0.0
    %1189 = vmatprep.subr.mxu0 0.0
    %1190 = vmatpush1.msra.mxu0 0.0
    %1191 = vmatprep.subr.mxu0 0.0
    %1192 = vmatpush1.msra.mxu0 0.0
    %1193 = vmatprep.subr.mxu0 0.0
    %1194 = vmatpush1.msra.mxu0 0.0
    %1195 = vmatprep.subr.mxu0 0.0
    %1196 = vmatpush1.msra.mxu0 0.0
    %1197 = vmatprep.subr.mxu0 0.0
    %1198 = vmatpush1.msra.mxu0 0.0
    %1199 = vmatprep.subr.mxu0 0.0
    %1200 = vmatpush1.msra.mxu0 0.0
    %1201 = vmatprep.subr.mxu0 0.0
    %1202 = vmatpush1.msra.mxu0 0.0
    %1203 = vmatprep.subr.mxu0 0.0
    %1204 = vmatpush1.msra.mxu0 0.0
    %1205 = vmatprep.subr.mxu0 0.0
    %1206 = vmatpush1.msra.mxu0 0.0
    %v1207 = vand.u32 %v1097, 4294901760
    %v1208 = vsub.f32 %v1097, %v1207
    %v1209 = vand.u32 %v1208, 4294901760
    %v1210 = vsub.f32 %v1208, %v1209
    %v1211 = vand.u32 %v1210, 4294901760
    %1212 = vmatprep.subr.mxu0 %v1211
    %v1213 = vand.u32 %v1094, 4294901760
    %v1214 = vsub.f32 %v1094, %v1213
    %v1215 = vand.u32 %v1214, 4294901760
    %v1216 = vsub.f32 %v1214, %v1215
    %v1217 = vand.u32 %v1216, 4294901760
    %1218 = vmatpush1.msra.mxu0 %v1217
    %1219 = vmatprep.subr.mxu0 0.0
    %1220 = vmatpush2.msra.mxu0 0.0
    %1221 = vmatprep.subr.mxu0 0.0
    %1222 = vmatpush2.msra.mxu0 0.0
    %1223 = vmatprep.subr.mxu0 0.0
    %1224 = vmatpush2.msra.mxu0 0.0
    %1225 = vmatprep.subr.mxu0 0.0
    %1226 = vmatpush2.msra.mxu0 0.0
    %1227 = vmatprep.subr.mxu0 0.0
    %1228 = vmatpush2.msra.mxu0 0.0
    %1229 = vmatprep.subr.mxu0 0.0
    %1230 = vmatpush2.msra.mxu0 0.0
    %1231 = vmatprep.subr.mxu0 0.0
    %1232 = vmatpush2.msra.mxu0 0.0
    %1233 = vmatprep.subr.mxu0 0.0
    %1234 = vmatpush2.msra.mxu0 0.0
    %1235 = vmatprep.subr.mxu0 0.0
    %1236 = vmatpush2.msra.mxu0 0.0
    %1237 = vmatprep.subr.mxu0 0.0
    %1238 = vmatpush2.msra.mxu0 0.0
    %1239 = vmatprep.subr.mxu0 0.0
    %1240 = vmatpush2.msra.mxu0 0.0
    %1241 = vmatprep.subr.mxu0 0.0
    %1242 = vmatpush2.msra.mxu0 0.0
    %1243 = vmatprep.subr.mxu0 0.0
    %1244 = vmatpush2.msra.mxu0 0.0
    %1245 = vmatprep.subr.mxu0 0.0
    %1246 = vmatpush2.msra.mxu0 0.0
    %1247 = vmatprep.subr.mxu0 0.0
    %1248 = vmatpush2.msra.mxu0 0.0
    %1249 = vmatprep.subr.mxu0 0.0
    %1250 = vmatpush2.msra.mxu0 0.0
    %1251 = vmatprep.mubr.f32.mxu0 0.0
    %v1252 = vand.u32 %v607, 4294901760
    %1253 = vmatmul.mubr.f32.gmra.mxu0 %v1252
    %v1254 = vpop.f32.mrf.mxu0
    %v1255 = vadd.f32 %v1173, %v1254
    %v1256 = vpop.f32.mrf.mxu0
    %v1257 = vadd.f32 %v1175, %v1256
    %1258 = vdwg.mxu0
    %1259 = vmatprep.subr.mxu0 0.0
    %1260 = vmatpush1.msra.mxu0 0.0
    %1261 = vmatprep.subr.mxu0 0.0
    %1262 = vmatpush1.msra.mxu0 0.0
    %1263 = vmatprep.subr.mxu0 0.0
    %1264 = vmatpush1.msra.mxu0 0.0
    %1265 = vmatprep.subr.mxu0 0.0
    %1266 = vmatpush1.msra.mxu0 0.0
    %1267 = vmatprep.subr.mxu0 0.0
    %1268 = vmatpush1.msra.mxu0 0.0
    %1269 = vmatprep.subr.mxu0 0.0
    %1270 = vmatpush1.msra.mxu0 0.0
    %1271 = vmatprep.subr.mxu0 0.0
    %1272 = vmatpush1.msra.mxu0 0.0
    %1273 = vmatprep.subr.mxu0 0.0
    %1274 = vmatpush1.msra.mxu0 0.0
    %1275 = vmatprep.subr.mxu0 0.0
    %1276 = vmatpush1.msra.mxu0 0.0
    %1277 = vmatprep.subr.mxu0 0.0
    %1278 = vmatpush1.msra.mxu0 0.0
    %1279 = vmatprep.subr.mxu0 0.0
    %1280 = vmatpush1.msra.mxu0 0.0
    %1281 = vmatprep.subr.mxu0 0.0
    %1282 = vmatpush1.msra.mxu0 0.0
    %1283 = vmatprep.subr.mxu0 0.0
    %1284 = vmatpush1.msra.mxu0 0.0
    %1285 = vmatprep.subr.mxu0 0.0
    %1286 = vmatpush1.msra.mxu0 0.0
    %1287 = vmatprep.subr.mxu0 0.0
    %1288 = vmatpush1.msra.mxu0 0.0
    %v1289 = vand.u32 %v1097, 4294901760
    %v1290 = vsub.f32 %v1097, %v1289
    %1291 = vmatprep.subr.mxu0 %v1290
    %v1292 = vand.u32 %v1094, 4294901760
    %v1293 = vsub.f32 %v1094, %v1292
    %1294 = vmatpush1.msra.mxu0 %v1293
    %1295 = vmatprep.subr.mxu0 0.0
    %1296 = vmatpush2.msra.mxu0 0.0
    %1297 = vmatprep.subr.mxu0 0.0
    %1298 = vmatpush2.msra.mxu0 0.0
    %1299 = vmatprep.subr.mxu0 0.0
    %1300 = vmatpush2.msra.mxu0 0.0
    %1301 = vmatprep.subr.mxu0 0.0
    %1302 = vmatpush2.msra.mxu0 0.0
    %1303 = vmatprep.subr.mxu0 0.0
    %1304 = vmatpush2.msra.mxu0 0.0
    %1305 = vmatprep.subr.mxu0 0.0
    %1306 = vmatpush2.msra.mxu0 0.0
    %1307 = vmatprep.subr.mxu0 0.0
    %1308 = vmatpush2.msra.mxu0 0.0
    %1309 = vmatprep.subr.mxu0 0.0
    %1310 = vmatpush2.msra.mxu0 0.0
    %1311 = vmatprep.subr.mxu0 0.0
    %1312 = vmatpush2.msra.mxu0 0.0
    %1313 = vmatprep.subr.mxu0 0.0
    %1314 = vmatpush2.msra.mxu0 0.0
    %1315 = vmatprep.subr.mxu0 0.0
    %1316 = vmatpush2.msra.mxu0 0.0
    %1317 = vmatprep.subr.mxu0 0.0
    %1318 = vmatpush2.msra.mxu0 0.0
    %1319 = vmatprep.subr.mxu0 0.0
    %1320 = vmatpush2.msra.mxu0 0.0
    %1321 = vmatprep.subr.mxu0 0.0
    %1322 = vmatpush2.msra.mxu0 0.0
    %1323 = vmatprep.subr.mxu0 0.0
    %1324 = vmatpush2.msra.mxu0 0.0
    %1325 = vmatprep.subr.mxu0 0.0
    %1326 = vmatpush2.msra.mxu0 0.0
    %1327 = vmatprep.mubr.f32.mxu0 0.0
    %v1328 = vand.u32 %v607, 4294901760
    %v1329 = vsub.f32 %v607, %v1328
    %1330 = vmatmul.mubr.f32.gmra.mxu0 %v1329
    %v1331 = vpop.f32.mrf.mxu0
    %v1332 = vadd.f32 %v1255, %v1331
    %v1333 = vpop.f32.mrf.mxu0
    %v1334 = vadd.f32 %v1257, %v1333
    %1335 = vdwg.mxu0
    %1336 = vmatprep.subr.mxu0 0.0
    %1337 = vmatpush1.msra.mxu0 0.0
    %1338 = vmatprep.subr.mxu0 0.0
    %1339 = vmatpush1.msra.mxu0 0.0
    %1340 = vmatprep.subr.mxu0 0.0
    %1341 = vmatpush1.msra.mxu0 0.0
    %1342 = vmatprep.subr.mxu0 0.0
    %1343 = vmatpush1.msra.mxu0 0.0
    %1344 = vmatprep.subr.mxu0 0.0
    %1345 = vmatpush1.msra.mxu0 0.0
    %1346 = vmatprep.subr.mxu0 0.0
    %1347 = vmatpush1.msra.mxu0 0.0
    %1348 = vmatprep.subr.mxu0 0.0
    %1349 = vmatpush1.msra.mxu0 0.0
    %1350 = vmatprep.subr.mxu0 0.0
    %1351 = vmatpush1.msra.mxu0 0.0
    %1352 = vmatprep.subr.mxu0 0.0
    %1353 = vmatpush1.msra.mxu0 0.0
    %1354 = vmatprep.subr.mxu0 0.0
    %1355 = vmatpush1.msra.mxu0 0.0
    %1356 = vmatprep.subr.mxu0 0.0
    %1357 = vmatpush1.msra.mxu0 0.0
    %1358 = vmatprep.subr.mxu0 0.0
    %1359 = vmatpush1.msra.mxu0 0.0
    %1360 = vmatprep.subr.mxu0 0.0
    %1361 = vmatpush1.msra.mxu0 0.0
    %1362 = vmatprep.subr.mxu0 0.0
    %1363 = vmatpush1.msra.mxu0 0.0
    %1364 = vmatprep.subr.mxu0 0.0
    %1365 = vmatpush1.msra.mxu0 0.0
    %v1366 = vand.u32 %v1097, 4294901760
    %1367 = vmatprep.subr.mxu0 %v1366
    %v1368 = vand.u32 %v1094, 4294901760
    %1369 = vmatpush1.msra.mxu0 %v1368
    %1370 = vmatprep.subr.mxu0 0.0
    %1371 = vmatpush2.msra.mxu0 0.0
    %1372 = vmatprep.subr.mxu0 0.0
    %1373 = vmatpush2.msra.mxu0 0.0
    %1374 = vmatprep.subr.mxu0 0.0
    %1375 = vmatpush2.msra.mxu0 0.0
    %1376 = vmatprep.subr.mxu0 0.0
    %1377 = vmatpush2.msra.mxu0 0.0
    %1378 = vmatprep.subr.mxu0 0.0
    %1379 = vmatpush2.msra.mxu0 0.0
    %1380 = vmatprep.subr.mxu0 0.0
    %1381 = vmatpush2.msra.mxu0 0.0
    %1382 = vmatprep.subr.mxu0 0.0
    %1383 = vmatpush2.msra.mxu0 0.0
    %1384 = vmatprep.subr.mxu0 0.0
    %1385 = vmatpush2.msra.mxu0 0.0
    %1386 = vmatprep.subr.mxu0 0.0
    %1387 = vmatpush2.msra.mxu0 0.0
    %1388 = vmatprep.subr.mxu0 0.0
    %1389 = vmatpush2.msra.mxu0 0.0
    %1390 = vmatprep.subr.mxu0 0.0
    %1391 = vmatpush2.msra.mxu0 0.0
    %1392 = vmatprep.subr.mxu0 0.0
    %1393 = vmatpush2.msra.mxu0 0.0
    %1394 = vmatprep.subr.mxu0 0.0
    %1395 = vmatpush2.msra.mxu0 0.0
    %1396 = vmatprep.subr.mxu0 0.0
    %1397 = vmatpush2.msra.mxu0 0.0
    %1398 = vmatprep.subr.mxu0 0.0
    %1399 = vmatpush2.msra.mxu0 0.0
    %1400 = vmatprep.subr.mxu0 0.0
    %1401 = vmatpush2.msra.mxu0 0.0
    %1402 = vmatprep.mubr.f32.mxu0 0.0
    %v1403 = vand.u32 %v607, 4294901760
    %v1404 = vsub.f32 %v607, %v1403
    %v1405 = vand.u32 %v1404, 4294901760
    %1406 = vmatmul.mubr.f32.gmra.mxu0 %v1405
    %v1407 = vpop.f32.mrf.mxu0
    %v1408 = vadd.f32 %v1332, %v1407
    %v1409 = vpop.f32.mrf.mxu0
    %v1410 = vadd.f32 %v1334, %v1409
    %1411 = vdwg.mxu0
    %1412 = vmatprep.subr.mxu0 0.0
    %1413 = vmatpush1.msra.mxu0 0.0
    %1414 = vmatprep.subr.mxu0 0.0
    %1415 = vmatpush1.msra.mxu0 0.0
    %1416 = vmatprep.subr.mxu0 0.0
    %1417 = vmatpush1.msra.mxu0 0.0
    %1418 = vmatprep.subr.mxu0 0.0
    %1419 = vmatpush1.msra.mxu0 0.0
    %1420 = vmatprep.subr.mxu0 0.0
    %1421 = vmatpush1.msra.mxu0 0.0
    %1422 = vmatprep.subr.mxu0 0.0
    %1423 = vmatpush1.msra.mxu0 0.0
    %1424 = vmatprep.subr.mxu0 0.0
    %1425 = vmatpush1.msra.mxu0 0.0
    %1426 = vmatprep.subr.mxu0 0.0
    %1427 = vmatpush1.msra.mxu0 0.0
    %1428 = vmatprep.subr.mxu0 0.0
    %1429 = vmatpush1.msra.mxu0 0.0
    %1430 = vmatprep.subr.mxu0 0.0
    %1431 = vmatpush1.msra.mxu0 0.0
    %1432 = vmatprep.subr.mxu0 0.0
    %1433 = vmatpush1.msra.mxu0 0.0
    %1434 = vmatprep.subr.mxu0 0.0
    %1435 = vmatpush1.msra.mxu0 0.0
    %1436 = vmatprep.subr.mxu0 0.0
    %1437 = vmatpush1.msra.mxu0 0.0
    %1438 = vmatprep.subr.mxu0 0.0
    %1439 = vmatpush1.msra.mxu0 0.0
    %1440 = vmatprep.subr.mxu0 0.0
    %1441 = vmatpush1.msra.mxu0 0.0
    %v1442 = vand.u32 %v1097, 4294901760
    %v1443 = vsub.f32 %v1097, %v1442
    %v1444 = vand.u32 %v1443, 4294901760
    %1445 = vmatprep.subr.mxu0 %v1444
    %v1446 = vand.u32 %v1094, 4294901760
    %v1447 = vsub.f32 %v1094, %v1446
    %v1448 = vand.u32 %v1447, 4294901760
    %1449 = vmatpush1.msra.mxu0 %v1448
    %1450 = vmatprep.subr.mxu0 0.0
    %1451 = vmatpush2.msra.mxu0 0.0
    %1452 = vmatprep.subr.mxu0 0.0
    %1453 = vmatpush2.msra.mxu0 0.0
    %1454 = vmatprep.subr.mxu0 0.0
    %1455 = vmatpush2.msra.mxu0 0.0
    %1456 = vmatprep.subr.mxu0 0.0
    %1457 = vmatpush2.msra.mxu0 0.0
    %1458 = vmatprep.subr.mxu0 0.0
    %1459 = vmatpush2.msra.mxu0 0.0
    %1460 = vmatprep.subr.mxu0 0.0
    %1461 = vmatpush2.msra.mxu0 0.0
    %1462 = vmatprep.subr.mxu0 0.0
    %1463 = vmatpush2.msra.mxu0 0.0
    %1464 = vmatprep.subr.mxu0 0.0
    %1465 = vmatpush2.msra.mxu0 0.0
    %1466 = vmatprep.subr.mxu0 0.0
    %1467 = vmatpush2.msra.mxu0 0.0
    %1468 = vmatprep.subr.mxu0 0.0
    %1469 = vmatpush2.msra.mxu0 0.0
    %1470 = vmatprep.subr.mxu0 0.0
    %1471 = vmatpush2.msra.mxu0 0.0
    %1472 = vmatprep.subr.mxu0 0.0
    %1473 = vmatpush2.msra.mxu0 0.0
    %1474 = vmatprep.subr.mxu0 0.0
    %1475 = vmatpush2.msra.mxu0 0.0
    %1476 = vmatprep.subr.mxu0 0.0
    %1477 = vmatpush2.msra.mxu0 0.0
    %1478 = vmatprep.subr.mxu0 0.0
    %1479 = vmatpush2.msra.mxu0 0.0
    %1480 = vmatprep.subr.mxu0 0.0
    %1481 = vmatpush2.msra.mxu0 0.0
    %1482 = vmatprep.mubr.f32.mxu0 0.0
    %v1483 = vand.u32 %v607, 4294901760
    %1484 = vmatmul.mubr.f32.gmra.mxu0 %v1483
    %v1485 = vpop.f32.mrf.mxu0
    %v1486 = vadd.f32 %v1408, %v1485
    %v1487 = vpop.f32.mrf.mxu0
    %v1488 = vadd.f32 %v1410, %v1487
    %1489 = vdwg.mxu0
    %1490 = vmatprep.subr.mxu0 0.0
    %1491 = vmatpush1.msra.mxu0 0.0
    %1492 = vmatprep.subr.mxu0 0.0
    %1493 = vmatpush1.msra.mxu0 0.0
    %1494 = vmatprep.subr.mxu0 0.0
    %1495 = vmatpush1.msra.mxu0 0.0
    %1496 = vmatprep.subr.mxu0 0.0
    %1497 = vmatpush1.msra.mxu0 0.0
    %1498 = vmatprep.subr.mxu0 0.0
    %1499 = vmatpush1.msra.mxu0 0.0
    %1500 = vmatprep.subr.mxu0 0.0
    %1501 = vmatpush1.msra.mxu0 0.0
    %1502 = vmatprep.subr.mxu0 0.0
    %1503 = vmatpush1.msra.mxu0 0.0
    %1504 = vmatprep.subr.mxu0 0.0
    %1505 = vmatpush1.msra.mxu0 0.0
    %1506 = vmatprep.subr.mxu0 0.0
    %1507 = vmatpush1.msra.mxu0 0.0
    %1508 = vmatprep.subr.mxu0 0.0
    %1509 = vmatpush1.msra.mxu0 0.0
    %1510 = vmatprep.subr.mxu0 0.0
    %1511 = vmatpush1.msra.mxu0 0.0
    %1512 = vmatprep.subr.mxu0 0.0
    %1513 = vmatpush1.msra.mxu0 0.0
    %1514 = vmatprep.subr.mxu0 0.0
    %1515 = vmatpush1.msra.mxu0 0.0
    %1516 = vmatprep.subr.mxu0 0.0
    %1517 = vmatpush1.msra.mxu0 0.0
    %1518 = vmatprep.subr.mxu0 0.0
    %1519 = vmatpush1.msra.mxu0 0.0
    %v1520 = vand.u32 %v1097, 4294901760
    %1521 = vmatprep.subr.mxu0 %v1520
    %v1522 = vand.u32 %v1094, 4294901760
    %1523 = vmatpush1.msra.mxu0 %v1522
    %1524 = vmatprep.subr.mxu0 0.0
    %1525 = vmatpush2.msra.mxu0 0.0
    %1526 = vmatprep.subr.mxu0 0.0
    %1527 = vmatpush2.msra.mxu0 0.0
    %1528 = vmatprep.subr.mxu0 0.0
    %1529 = vmatpush2.msra.mxu0 0.0
    %1530 = vmatprep.subr.mxu0 0.0
    %1531 = vmatpush2.msra.mxu0 0.0
    %1532 = vmatprep.subr.mxu0 0.0
    %1533 = vmatpush2.msra.mxu0 0.0
    %1534 = vmatprep.subr.mxu0 0.0
    %1535 = vmatpush2.msra.mxu0 0.0
    %1536 = vmatprep.subr.mxu0 0.0
    %1537 = vmatpush2.msra.mxu0 0.0
    %1538 = vmatprep.subr.mxu0 0.0
    %1539 = vmatpush2.msra.mxu0 0.0
    %1540 = vmatprep.subr.mxu0 0.0
    %1541 = vmatpush2.msra.mxu0 0.0
    %1542 = vmatprep.subr.mxu0 0.0
    %1543 = vmatpush2.msra.mxu0 0.0
    %1544 = vmatprep.subr.mxu0 0.0
    %1545 = vmatpush2.msra.mxu0 0.0
    %1546 = vmatprep.subr.mxu0 0.0
    %1547 = vmatpush2.msra.mxu0 0.0
    %1548 = vmatprep.subr.mxu0 0.0
    %1549 = vmatpush2.msra.mxu0 0.0
    %1550 = vmatprep.subr.mxu0 0.0
    %1551 = vmatpush2.msra.mxu0 0.0
    %1552 = vmatprep.subr.mxu0 0.0
    %1553 = vmatpush2.msra.mxu0 0.0
    %1554 = vmatprep.subr.mxu0 0.0
    %1555 = vmatpush2.msra.mxu0 0.0
    %1556 = vmatprep.mubr.f32.mxu0 0.0
    %v1557 = vand.u32 %v607, 4294901760
    %1558 = vmatmul.mubr.f32.gmra.mxu0 %v1557
    %v1559 = vpop.f32.mrf.mxu0
    %v1560 = vadd.f32 %v1486, %v1559
    %v1561 = vpop.f32.mrf.mxu0
    %v1562 = vadd.f32 %v1488, %v1561
    %1563 = vdwg.mxu0
    %v1564 = vmul.f32 %v95, %v1560
    %v1565 = vmul.f32 %v97, %v1562
    %vm1566 = vcmp.eq.f32.partialorder %v51, %v1075
    %vm1567 = vcmp.eq.f32.partialorder %v51, %v1077
    %v1568 = vsel %vm1566, 1.0, 0.0
    %v1569 = vsel %vm1567, 1.0, 0.0
    %v1570 = vld [vmem:[#allocation4] sm:$0xff]
    %v1571 = vadd.f32 %v1564, %v1565
    %v1572 = vadd.f32 %v1570, %v1571
    %1573 = vst [vmem:[#allocation4] sm:$0xff] %v1572
    %v1574 = vld [vmem:[#allocation2] sm:$0xff]
    %v1575 = vmul.f32 %v1564, %v1568
    %v1576 = vmul.f32 %v1565, %v1569
    %v1577 = vadd.f32 %v1575, %v1576
    %v1578 = vadd.f32 %v1574, %v1577
    %1579 = vst [vmem:[#allocation2] sm:$0xff] %v1578
    %v1580 = vld [vmem:[#allocation3] sm:$0xff]
    %v1581 = vadd.f32 %v1568, %v1569
    %v1582 = vadd.f32 %v1580, %v1581
    %1583 = vst [vmem:[#allocation3] sm:$0xff] %v1582
    %v1584 = vld [vmem:[#allocation6] sm:$0xff]
    %v1585 = vmul.f32 %v45, %v1568
    %v1586 = vmul.f32 %v46, %v1569
    %v1587 = vadd.f32 %v1585, %v1586
    %v1588 = vadd.f32 %v1584, %v1587
    %1589 = vst [vmem:[#allocation6] sm:$0xff] %v1588
    %v1590 = vld [vmem:[#allocation5] sm:$0x3]
    %v1591 = vadd.f32 %v1091, %v1092
    %v1592 = vadd.f32 %v1590, %v1591
    %1593 = vst [vmem:[#allocation5] sm:$0x3] %v1592
    // Predicated region
    $region22: #{tpu_custom_call.1} parent=1 // pred_check
      %p1594 = pneg %p36
    $region23: #{tpu_custom_call.1} parent=1 // pred_check_branch
      %1596 = sbr.rel (%p1594) target = $region25
    $region24: #{tpu_custom_call.1} parent=1 // pred_region
      %v1597 = vld [vmem:[#allocation3] sm:$0xff]
      %1598 = vadd.xlane.f32.xlu0 %v1597
      %v1599 = vpop.xlane.xlu0 %1598
      %v1600 = vld [vmem:[#allocation4] sm:$0xff]
      %1601 = vadd.xlane.f32.xlu0 %v1600
      %v1602 = vpop.xlane.xlu0 %1601
      %v1603 = vld [vmem:[#allocation2] sm:$0xff]
      %1604 = vadd.xlane.f32.xlu0 %v1603
      %v1605 = vpop.xlane.xlu0 %1604
      %v1606 = vmul.f32 %v1599, %v1599
      %v1607 = vadd.f32 %v1606, 1e-05
      %v1608 = vrcp.pop %v1607
      %v1609 = vmul.f32 1.0, %v1608
      %v1610 = vmul.f32 %v1609, %v1605
      %v1611 = vmul.f32 %v1610, 2.0
      %v1612 = vadd.f32 %v1599, %v1602
      %v1613 = vmul.f32 %v1609, %v1612
      %v1614 = vadd.f32 %v1613, 1e-05
      %v1615 = vrcp.pop %v1614
      %v1616 = vmul.f32 %v1611, %v1615
      %v1617 = vsub.f32 1.0, %v1616
      %v1618 = vrot.slane %v1617, 4
      %v1619 = vadd.f32 %v1617, %v1618
      %v1620 = vrot.slane %v1619, 2
      %v1621 = vadd.f32 %v1619, %v1620
      %v1622 = vrot.slane %v1621, 1
      %v1623 = vadd.f32 %v1621, %v1622
      %v1624 = vld [vmem:[#allocation5] sm:$0x3]
      %v1625 = vsel %vm609, %v1624, 0.0
      %1626 = vadd.xlane.f32.xlu0 %v1625
      %v1627 = vpop.xlane.xlu0 %1626
      %v1628 = vsel %vm609, %v1627, 0.0
      %v1629 = vrot.slane %v1628, 4
      %v1630 = vadd.f32 %v1628, %v1629
      %v1631 = vrot.slane %v1630, 2
      %v1632 = vadd.f32 %v1630, %v1631
      %v1633 = vrot.slane %v1632, 1
      %v1634 = vadd.f32 %v1632, %v1633
      %v1635 = vld [vmem:[#allocation6] sm:$0xff]
      %1636 = vadd.xlane.f32.xlu0 %v1635
      %v1637 = vpop.xlane.xlu0 %1636
      %v1638 = vrot.slane %v1637, 4
      %v1639 = vadd.f32 %v1637, %v1638
      %v1640 = vrot.slane %v1639, 2
      %v1641 = vadd.f32 %v1639, %v1640
      %v1642 = vrot.slane %v1641, 1
      %v1643 = vadd.f32 %v1641, %v1642
      %v1644 = vsub.f32 %v1634, %v1643
      %v1645 = vmul.f32 %v1623, 0.0625
      %v1646 = vmul.f32 %v1644, 0.0009765625
      %v1647 = vadd.f32 %v1645, %v1646
      %vm1648 = vcmask 0
      %1649 = vst.msk [vmem:[#allocation12] sm:$0x1] %vm1648, %v1647
    $region25: #{tpu_custom_call.1} parent=1 // pred_fallthru
      _
    // Predicated region
    $region26: #{tpu_custom_call.1} parent=1 // pred_check
      _
    $region27: #{tpu_custom_call.1} parent=1 // pred_check_branch
      %1651 = sbr.rel (0) target = $region29
    $region28: #{tpu_custom_call.1} parent=1 // pred_region
      %s1653 = ssub.s32 16, 16
      %1654 = vsyncadd [#allocation9], %s1653
      %s1656 = sshll.u32 [#allocation12], 4
      %s1657 = int_to_ptr.vmem [resolvable:$true] %s1656
      %1659 = dma.vmem_to_hbm [thread:$0]  %s1657, 16, %s2, [#allocation9]
    $region29: #{tpu_custom_call.1} parent=1 // pred_fallthru
      _
    // Predicated region
    $region30: #{tpu_custom_call.1} parent=1 // pred_check
      _
    $region31: #{tpu_custom_call.1} parent=1 // pred_check_branch
      %1661 = sbr.rel (0) target = $region33
    $region32: #{tpu_custom_call.1} parent=1 // pred_region
      %1662 = dma.done [#allocation9], 16
    $region33: #{tpu_custom_call.1} parent=1 // pred_fallthru
      _
    %1663 = vsyncpa [#allocation8], 1
    %1664 = vsyncpa [#allocation11], 1
    %1665 = vsyncpa [#allocation9], 1

</llo_original>
